<compile_context>
chip_gen: v7x
topology: tpu7x:2x2x1
jax: 0.10.0
libtpu: 0.0.40
codegen_flags: <defaults>
</compile_context>

<pallas_src>
import jax
import jax.numpy as jnp
from jax.experimental import pallas as pl
from jax.experimental.pallas import tpu as pltpu


def _round_up(x, m):
    return (x + m - 1) // m * m


def _ffn_body(x_ref, w1_ref, b1_ref, w2_ref, b2_ref, o_ref, acc_ref, *, mask_ref=None):
    # x_ref: (tm, D) f32 | w1_ref: (D, th) bf16 | b1_ref: (1, th) f32
    # w2_ref: (th, D) bf16 | b2_ref: (1, D) f32 | o_ref: (tm, D)
    # acc_ref: (tm, D) f32 scratch, resident across the H (reduction) axis.
    h_idx = pl.program_id(1)

    @pl.when(h_idx == 0)
    def _init():
        acc_ref[...] = jnp.zeros_like(acc_ref)

    x = x_ref[...].astype(jnp.bfloat16)
    h = jnp.dot(x, w1_ref[...], preferred_element_type=jnp.float32)
    h = jnp.maximum(h + b1_ref[...], 0.0)                       # bias + ReLU in f32
    acc_ref[...] += jnp.dot(h.astype(jnp.bfloat16), w2_ref[...],
                            preferred_element_type=jnp.float32)

    @pl.when(h_idx == pl.num_programs(1) - 1)
    def _finalize():
        y = acc_ref[...] + b2_ref[...]
        if mask_ref is not None:
            y = y * mask_ref[...]                               # pre-scaled keep mask
        o_ref[...] = y.astype(o_ref.dtype)


def feed_forward(x, w1, b1, w2, b2, *, dropout_rate=0.2, training=False, seed=0,
                 tm=256, th=512):
    """x: [..., D] float32.  Returns same shape/dtype as x."""
    orig_shape = x.shape
    D = orig_shape[-1]
    H = w1.shape[1]

    xm = x.reshape(-1, D)
    M = xm.shape[0]

    # Row tile: big by default, clamped (and rows zero-padded) for small M.
    tm_eff = min(tm, _round_up(M, 8))
    Mp = _round_up(M, tm_eff)
    if Mp != M:
        xm = jnp.pad(xm, ((0, Mp - M), (0, 0)))

    # Hidden-dim tile (reduction axis of the second matmul).
    th_eff = min(th, H)
    assert H % th_eff == 0, "hidden dim must be divisible by the H tile"

    # bf16 weights at the MXU boundary (halves DMA bytes / VMEM residency).
    w1b = w1.astype(jnp.bfloat16)
    w2b = w2.astype(jnp.bfloat16)
    b1f = b1.astype(jnp.float32).reshape(1, H)
    b2f = b2.astype(jnp.float32).reshape(1, D)

    grid = (Mp // tm_eff, H // th_eff)

    in_specs = [
        pl.BlockSpec((tm_eff, D), lambda i, h: (i, 0)),   # x tile (resident over H)
        pl.BlockSpec((D, th_eff), lambda i, h: (0, h)),   # W1 column slab
        pl.BlockSpec((1, th_eff), lambda i, h: (0, h)),   # b1 slab
        pl.BlockSpec((th_eff, D), lambda i, h: (h, 0)),   # W2 row slab
        pl.BlockSpec((1, D),      lambda i, h: (0, 0)),   # b2
    ]
    inputs = [xm, w1b, b1f, w2b, b2f]

    use_dropout = training and dropout_rate > 0.0
    if use_dropout:
        keep = jax.random.bernoulli(jax.random.PRNGKey(seed),
                                    1.0 - dropout_rate, (Mp, D))
        mask = keep.astype(jnp.float32) * jnp.float32(1.0 / (1.0 - dropout_rate))
        inputs.append(mask)
        in_specs.append(pl.BlockSpec((tm_eff, D), lambda i, h: (i, 0)))

        def kernel(x_ref, w1_ref, b1_ref, w2_ref, b2_ref, m_ref, o_ref, acc_ref):
            _ffn_body(x_ref, w1_ref, b1_ref, w2_ref, b2_ref, o_ref, acc_ref,
                      mask_ref=m_ref)
    else:
        def kernel(x_ref, w1_ref, b1_ref, w2_ref, b2_ref, o_ref, acc_ref):
            _ffn_body(x_ref, w1_ref, b1_ref, w2_ref, b2_ref, o_ref, acc_ref)

    out = pl.pallas_call(
        kernel,
        out_shape=jax.ShapeDtypeStruct((Mp, D), x.dtype),
        grid=grid,
        in_specs=in_specs,
        out_specs=pl.BlockSpec((tm_eff, D), lambda i, h: (i, 0)),
        scratch_shapes=[pltpu.VMEM((tm_eff, D), jnp.float32)],
        compiler_params=pltpu.CompilerParams(
            dimension_semantics=("parallel", "arbitrary")),
    )(*inputs)

    return out[:M].reshape(orig_shape)


def init_params(key, n_embed):
    """Mimics torch.nn.Linear default init: U[-1/sqrt(fan_in), 1/sqrt(fan_in)]."""
    hidden = 4 * n_embed
    k1, k2, k3, k4 = jax.random.split(key, 4)
    lim1 = 1.0 / (n_embed ** 0.5)
    lim2 = 1.0 / (hidden ** 0.5)
    w1 = jax.random.uniform(k1, (n_embed, hidden), jnp.float32, -lim1, lim1)
    b1 = jax.random.uniform(k2, (1, hidden), jnp.float32, -lim1, lim1)
    w2 = jax.random.uniform(k3, (hidden, n_embed), jnp.float32, -lim2, lim2)
    b2 = jax.random.uniform(k4, (1, n_embed), jnp.float32, -lim2, lim2)
    return w1, b1, w2, b2


if __name__ == "__main__":
    n_embed = 384
    dropout = 0.2
    batch, seq = 2, 8

    key = jax.random.PRNGKey(0)
    kx, kp = jax.random.split(key)
    x = jax.random.normal(kx, (batch, seq, n_embed), dtype=jnp.float32)
    w1, b1, w2, b2 = init_params(kp, n_embed)

    # Eval mode (dropout = identity): deterministic check against a pure-JAX
    # reference that uses the same bf16-operand / f32-accumulate matmuls.
    y = feed_forward(x, w1, b1, w2, b2, dropout_rate=dropout, training=False)
    y = jax.block_until_ready(y)

    xm = x.reshape(-1, n_embed)
    h_ref = jnp.dot(xm.astype(jnp.bfloat16), w1.astype(jnp.bfloat16),
                    preferred_element_type=jnp.float32) + b1
    h_ref = jnp.maximum(h_ref, 0.0)
    ref = jnp.dot(h_ref.astype(jnp.bfloat16), w2.astype(jnp.bfloat16),
                  preferred_element_type=jnp.float32) + b2
    ref = ref.reshape(batch, seq, n_embed)

    assert y.shape == x.shape and y.dtype == x.dtype
    assert jnp.allclose(y, ref, atol=5e-3, rtol=1e-2)

    # Training-mode dropout path (host-generated mask applied in-kernel).
    y_train = jax.block_until_ready(
        feed_forward(x, w1, b1, w2, b2, dropout_rate=dropout,
                     training=True, seed=123))
    assert y_train.shape == x.shape
    assert bool(jnp.all(jnp.isfinite(y_train)))

    print("KERNEL_OK")
</pallas_src>

<mosaic_0001>
module attributes {stable_mosaic.version = 11 : i64} {
  func.func @kernel(%arg0: i32, %arg1: i32, %arg2: memref<16x384xf32, #tpu.memory_space<vmem>>, %arg3: memref<384x512xbf16, #tpu.memory_space<vmem>>, %arg4: memref<1x512xf32, #tpu.memory_space<vmem>>, %arg5: memref<512x384xbf16, #tpu.memory_space<vmem>>, %arg6: memref<1x384xf32, #tpu.memory_space<vmem>>, %arg7: memref<16x384xf32, #tpu.memory_space<vmem>>, %arg8: memref<16x384xf32, #tpu.memory_space<vmem>>) attributes {dimension_semantics = [#tpu.dimension_semantics<parallel>, #tpu.dimension_semantics<arbitrary>], iteration_bounds = array<i64: 1, 3>, scalar_prefetch = 0 : i64, scratch_operands = 1 : i64, tpu.core_type = #tpu.core_type<tc>, window_params = [{transform_indices = @transform_0, window_bounds = array<i64: 16, 384>}, {transform_indices = @transform_1, window_bounds = array<i64: 384, 512>}, {transform_indices = @transform_2, window_bounds = array<i64: 1, 512>}, {transform_indices = @transform_3, window_bounds = array<i64: 512, 384>}, {pipeline_mode = #tpu.pipeline_mode<synchronous>, transform_indices = @transform_4, window_bounds = array<i64: 1, 384>}, {transform_indices = @transform_5, window_bounds = array<i64: 16, 384>}]} {
    %c0_i32 = arith.constant 0 : i32
    %0 = arith.cmpi eq, %arg1, %c0_i32 : i32
    %1 = arith.extui %0 : i1 to i32
    %c0_i32_0 = arith.constant 0 : i32
    %2 = arith.cmpi ne, %1, %c0_i32_0 : i32
    scf.if %2 {
      %cst_15 = arith.constant 0.000000e+00 : f32
      %21 = vector.broadcast %cst_15 : f32 to vector<16x384xf32>
      %c0_16 = arith.constant 0 : index
      %c0_17 = arith.constant 0 : index
      %22 = vector.load %arg8[%c0_16, %c0_17] : memref<16x384xf32, #tpu.memory_space<vmem>>, vector<16x384xf32>
      tpu.vector_store %arg8[%c0_16, %c0_17], %21 {strides = array<i32>} : memref<16x384xf32, #tpu.memory_space<vmem>>, vector<16x384xf32>,
    } else {
    }
    %c0 = arith.constant 0 : index
    %c0_1 = arith.constant 0 : index
    %3 = vector.load %arg2[%c0, %c0_1] : memref<16x384xf32, #tpu.memory_space<vmem>>, vector<16x384xf32>
    %4 = arith.truncf %3 : vector<16x384xf32> to vector<16x384xbf16>
    %c0_2 = arith.constant 0 : index
    %c0_3 = arith.constant 0 : index
    %5 = vector.load %arg3[%c0_2, %c0_3] : memref<384x512xbf16, #tpu.memory_space<vmem>>, vector<384x512xbf16>
    %cst = arith.constant dense<0.000000e+00> : vector<16x512xf32>
    %6 = tpu.matmul %4, %5, %cst {dimension_numbers = #tpu.dot_dimension_numbers<[1], [0], [0], [1], [0, 0, 1, 1], [], []>} : vector<16x384xbf16>, vector<384x512xbf16>, vector<16x512xf32> -> vector<16x512xf32>
    %c0_4 = arith.constant 0 : index
    %c0_5 = arith.constant 0 : index
    %7 = vector.load %arg4[%c0_4, %c0_5] : memref<1x512xf32, #tpu.memory_space<vmem>>, vector<1x512xf32>
    %8 = vector.broadcast %7 : vector<1x512xf32> to vector<16x512xf32>
    %9 = arith.addf %6, %8 : vector<16x512xf32>
    %cst_6 = arith.constant 0.000000e+00 : f32
    %10 = vector.broadcast %cst_6 : f32 to vector<16x512xf32>
    %11 = arith.maximumf %9, %10 : vector<16x512xf32>
    %c0_7 = arith.constant 0 : index
    %c0_8 = arith.constant 0 : index
    %12 = vector.load %arg8[%c0_7, %c0_8] : memref<16x384xf32, #tpu.memory_space<vmem>>, vector<16x384xf32>
    %13 = arith.truncf %11 : vector<16x512xf32> to vector<16x512xbf16>
    %c0_9 = arith.constant 0 : index
    %c0_10 = arith.constant 0 : index
    %14 = vector.load %arg5[%c0_9, %c0_10] : memref<512x384xbf16, #tpu.memory_space<vmem>>, vector<512x384xbf16>
    %cst_11 = arith.constant dense<0.000000e+00> : vector<16x384xf32>
    %15 = tpu.matmul %13, %14, %cst_11 {dimension_numbers = #tpu.dot_dimension_numbers<[1], [0], [0], [1], [0, 0, 1, 1], [], []>} : vector<16x512xbf16>, vector<512x384xbf16>, vector<16x384xf32> -> vector<16x384xf32>
    %16 = arith.addf %12, %15 : vector<16x384xf32>
    %c0_12 = arith.constant 0 : index
    %c0_13 = arith.constant 0 : index
    %17 = vector.load %arg8[%c0_12, %c0_13] : memref<16x384xf32, #tpu.memory_space<vmem>>, vector<16x384xf32>
    tpu.vector_store %arg8[%c0_12, %c0_13], %16 {strides = array<i32>} : memref<16x384xf32, #tpu.memory_space<vmem>>, vector<16x384xf32>,
    %c2_i32 = arith.constant 2 : i32
    %18 = arith.cmpi eq, %arg1, %c2_i32 : i32
    %19 = arith.extui %18 : i1 to i32
    %c0_i32_14 = arith.constant 0 : i32
    %20 = arith.cmpi ne, %19, %c0_i32_14 : i32
    scf.if %20 {
      %c0_15 = arith.constant 0 : index
      %c0_16 = arith.constant 0 : index
      %21 = vector.load %arg8[%c0_15, %c0_16] : memref<16x384xf32, #tpu.memory_space<vmem>>, vector<16x384xf32>
      %c0_17 = arith.constant 0 : index
      %c0_18 = arith.constant 0 : index
      %22 = vector.load %arg6[%c0_17, %c0_18] : memref<1x384xf32, #tpu.memory_space<vmem>>, vector<1x384xf32>
      %23 = vector.broadcast %22 : vector<1x384xf32> to vector<16x384xf32>
      %24 = arith.addf %21, %23 : vector<16x384xf32>
      %c0_19 = arith.constant 0 : index
      %c0_20 = arith.constant 0 : index
      %25 = vector.load %arg7[%c0_19, %c0_20] : memref<16x384xf32, #tpu.memory_space<vmem>>, vector<16x384xf32>
      tpu.vector_store %arg7[%c0_19, %c0_20], %24 {strides = array<i32>} : memref<16x384xf32, #tpu.memory_space<vmem>>, vector<16x384xf32>,
    } else {
    }
    return
  }
  func.func @transform_0(%arg0: i32, %arg1: i32) -> (i32, i32) {
    %c0_i32 = arith.constant 0 : i32
    %c0_i32_0 = arith.constant 0 : i32
    return %arg0, %c0_i32 : i32, i32
  }
  func.func @transform_1(%arg0: i32, %arg1: i32) -> (i32, i32) {
    %c0_i32 = arith.constant 0 : i32
    %c0_i32_0 = arith.constant 0 : i32
    return %c0_i32, %arg1 : i32, i32
  }
  func.func @transform_2(%arg0: i32, %arg1: i32) -> (i32, i32) {
    %c0_i32 = arith.constant 0 : i32
    %c0_i32_0 = arith.constant 0 : i32
    return %c0_i32, %arg1 : i32, i32
  }
  func.func @transform_3(%arg0: i32, %arg1: i32) -> (i32, i32) {
    %c0_i32 = arith.constant 0 : i32
    %c0_i32_0 = arith.constant 0 : i32
    return %arg1, %c0_i32 : i32, i32
  }
  func.func @transform_4(%arg0: i32, %arg1: i32) -> (i32, i32) {
    %c0_i32 = arith.constant 0 : i32
    %c0_i32_0 = arith.constant 0 : i32
    %c0_i32_1 = arith.constant 0 : i32
    return %c0_i32, %c0_i32_0 : i32, i32
  }
  func.func @transform_5(%arg0: i32, %arg1: i32) -> (i32, i32) {
    %c0_i32 = arith.constant 0 : i32
    %c0_i32_0 = arith.constant 0 : i32
    return %arg0, %c0_i32 : i32, i32
  }
}

</mosaic_0001>

<llo_original>
// kernel: tpu_custom_call.1
$region0: #{tpu_custom_call.1}
  #allocation0 [shape = 'u32[]', space=smem, size = 0x4, offset = 0x4, fixed_abs, tag = 'smem constant byte address 0x4 - core index']
  #allocation1 [shape = 'u32[144,128]{1,0:T(1,128)}', space=vmem, size = 0x12000, scoped, tag = 'internal scratch']
  #allocation2 [shape = 'f32[16,384]{1,0:T(8,128)}', space=vmem, size = 0x6000, scoped, tag = 'scratch operand']
  %s0 = inlined_call_operand.hbm [shape: f32[16,384], index: 0, kind: input, shape index: {}]
  %s1 = inlined_call_operand.hbm [shape: bf16[384,1536], index: 1, kind: input, shape index: {}]
  %s2 = inlined_call_operand.hbm [shape: f32[1,1536], index: 2, kind: input, shape index: {}]
  %s3 = inlined_call_operand.hbm [shape: bf16[1536,384], index: 3, kind: input, shape index: {}]
  %s4 = inlined_call_operand.hbm [shape: f32[1,384], index: 4, kind: input, shape index: {}]
  %s5 = inlined_call_operand.hbm [shape: f32[16,384], index: 5, kind: output, shape index: {}]
  %s6 = sld [smem:[#allocation0]]
  $region81: #{tpu_custom_call.1} parent=0
    _
  %s8 = ssub.s32 1, %s6
  %s9 = scalar_select 0, %s8, %s6
  $region1: #{tpu_custom_call.1} parent=0
    #allocation3 [shape = 'u8[24576]{0}', space=vmem, size = 0x6000, scoped, tag = 'input window, operand 0, single buffered']
    #allocation4 [shape = 's32[2]{0}', space=sflag, size = 0x8, scoped, tag = 'scoped memory for tpu_custom_call.1']
    #allocation5 [shape = 's32[2]{0}', space=sflag, size = 0x8, scoped, tag = 'scoped memory for tpu_custom_call.1']
    #allocation6 [shape = 'u8[786432]{0}', space=vmem, size = 0xc0000, scoped, tag = 'input window, operand 1']
    #allocation7 [shape = 's32[2]{0}', space=sflag, size = 0x8, scoped, tag = 'scoped memory for tpu_custom_call.1']
    #allocation8 [shape = 'u8[4096]{0}', space=vmem, size = 0x1000, scoped, tag = 'input window, operand 2']
    #allocation9 [shape = 'u8[786432]{0}', space=vmem, size = 0xc0000, scoped, tag = 'input window, operand 3']
    #allocation10 [shape = 's32[2]{0}', space=sflag, size = 0x8, scoped, tag = 'scoped memory for tpu_custom_call.1']
    #allocation11 [shape = 'u8[1536]{0}', space=vmem, size = 0x800, scoped, tag = 'input window, operand 4, single buffered']
    #allocation12 [shape = 'u8[24576]{0}', space=vmem, size = 0x6000, scoped, tag = 'output window, operand 0, single buffered']
    %10 = vsyncpa [#allocation4], 0
    %11 = vsyncpa [#allocation7], 0
    %s12 = scalar_lea.sflag [#allocation7], 1
    %13 = vsyncpa %s12, 0
    %14 = vsyncpa [#allocation10], 0
    %s15 = scalar_lea.sflag [#allocation10], 1
    %16 = vsyncpa %s15, 0
    %17 = vsyncpa [#allocation5], 0
    loop: start=0, step=1, limit=5
    $region2: #{tpu_custom_call.1} parent=1 // loop_pre_header
      _
    $region3: #{tpu_custom_call.1} parent=1 // loop_header
      %s19 = sphi 0, %s23
      %p20 = scmp.ge.s32.totalorder %s19, 5
      %s26 = sphi 0, %s38
      %s27 = sphi 0, %s34
      %s28 = sphi 0, %s26
      %s29 = sphi 0, %s27
      %s30 = sphi 0, %s28
      %s31 = sphi 0, %s29
      %s41 = sphi 0, %s43
      %s44 = sphi 0, %s41
      %s45 = sphi 0, %s44
      %s61 = sphi 0, %s45
      %s67 = sphi 0, %s69
      %s70 = sphi 0, %s67
      %s71 = sphi 0, %s70
      %s87 = sphi 0, %s71
      %s93 = sphi 0, %s95
      %s96 = sphi 0, %s93
      %s97 = sphi 0, %s96
      %s113 = sphi 0, %s97
      %s119 = sphi 0, %s121
      %s122 = sphi 0, %s119
      %s123 = sphi 0, %s122
      %s139 = sphi 0, %s123
      %s143 = sphi 0, %s143
      %s145 = sphi 0, %s143
      %s146 = sphi 0, %s145
      %s160 = sphi 0, %s146
      %s166 = sphi 0, %s168
      %s169 = sphi 0, %s166
      %s170 = sphi 0, %s169
      %s186 = sphi 0, %s170
    $region4: #{tpu_custom_call.1} parent=1 // loop_header_branch
      %22 = sbr.rel (%p20) target = $region8
    $region5: #{tpu_custom_call.1} parent=1 // loop_body
      %s24 = ssub.s32 %s19, 1
      %s25 = ssub.s32 %s19, 2
      %s32 = sadd.s32 1, %s27
      %p33 = scmp.ge.s32.totalorder %s32, 3
      %s34 = scalar_select %p33, 0, %s32
      %s35 = sadd.s32 1, %s26
      %s36 = scalar_select %p33, %s35, %s26
      %p37 = scmp.ge.s32.totalorder %s36, 1
      %s38 = scalar_select %p37, 0, %s36
      %s39 = ssub.s32 %s26, %s38
      %p40 = scmp.eq.s32.totalorder %s39, 0
      %s42 = sadd.s32 %s41, 1
      %s43 = scalar_select %p40, %s41, %s42
      %p46 = pneg %p40
      %p47 = scmp.eq.s32.totalorder %s19, 2
      %p48 = por %p46, %p47
      %p49 = scmp.ne.s32.totalorder %s41, %s44
      %p50 = scmp.eq.s32.totalorder %s19, 0
      %p51 = por %p49, %p50
      %p52 = scmp.ne.s32.totalorder %s41, %s44
      %p53 = scmp.eq.s32.totalorder %s24, 2
      %p54 = por %p52, %p53
      %p55 = scmp.ne.s32.totalorder %s44, %s45
      %p56 = scmp.eq.s32.totalorder %s24, 0
      %p57 = por %p55, %p56
      %p58 = scmp.ne.s32.totalorder %s44, %s45
      %p59 = scmp.eq.s32.totalorder %s25, 2
      %p60 = por %p58, %p59
      %p62 = scmp.ne.s32.totalorder %s45, %s61
      %p63 = scmp.eq.s32.totalorder %s25, 0
      %p64 = por %p62, %p63
      %s65 = ssub.s32 %s27, %s34
      %p66 = scmp.eq.s32.totalorder %s65, 0
      %s68 = sadd.s32 %s67, 1
      %s69 = scalar_select %p66, %s67, %s68
      %p72 = pneg %p66
      %p73 = scmp.eq.s32.totalorder %s19, 2
      %p74 = por %p72, %p73
      %p75 = scmp.ne.s32.totalorder %s67, %s70
      %p76 = scmp.eq.s32.totalorder %s19, 0
      %p77 = por %p75, %p76
      %p78 = scmp.ne.s32.totalorder %s67, %s70
      %p79 = scmp.eq.s32.totalorder %s24, 2
      %p80 = por %p78, %p79
      %p81 = scmp.ne.s32.totalorder %s70, %s71
      %p82 = scmp.eq.s32.totalorder %s24, 0
      %p83 = por %p81, %p82
      %p84 = scmp.ne.s32.totalorder %s70, %s71
      %p85 = scmp.eq.s32.totalorder %s25, 2
      %p86 = por %p84, %p85
      %p88 = scmp.ne.s32.totalorder %s71, %s87
      %p89 = scmp.eq.s32.totalorder %s25, 0
      %p90 = por %p88, %p89
      %s91 = ssub.s32 %s27, %s34
      %p92 = scmp.eq.s32.totalorder %s91, 0
      %s94 = sadd.s32 %s93, 1
      %s95 = scalar_select %p92, %s93, %s94
      %p98 = pneg %p92
      %p99 = scmp.eq.s32.totalorder %s19, 2
      %p100 = por %p98, %p99
      %p101 = scmp.ne.s32.totalorder %s93, %s96
      %p102 = scmp.eq.s32.totalorder %s19, 0
      %p103 = por %p101, %p102
      %p104 = scmp.ne.s32.totalorder %s93, %s96
      %p105 = scmp.eq.s32.totalorder %s24, 2
      %p106 = por %p104, %p105
      %p107 = scmp.ne.s32.totalorder %s96, %s97
      %p108 = scmp.eq.s32.totalorder %s24, 0
      %p109 = por %p107, %p108
      %p110 = scmp.ne.s32.totalorder %s96, %s97
      %p111 = scmp.eq.s32.totalorder %s25, 2
      %p112 = por %p110, %p111
      %p114 = scmp.ne.s32.totalorder %s97, %s113
      %p115 = scmp.eq.s32.totalorder %s25, 0
      %p116 = por %p114, %p115
      %s117 = ssub.s32 %s27, %s34
      %p118 = scmp.eq.s32.totalorder %s117, 0
      %s120 = sadd.s32 %s119, 1
      %s121 = scalar_select %p118, %s119, %s120
      %p124 = pneg %p118
      %p125 = scmp.eq.s32.totalorder %s19, 2
      %p126 = por %p124, %p125
      %p127 = scmp.ne.s32.totalorder %s119, %s122
      %p128 = scmp.eq.s32.totalorder %s19, 0
      %p129 = por %p127, %p128
      %p130 = scmp.ne.s32.totalorder %s119, %s122
      %p131 = scmp.eq.s32.totalorder %s24, 2
      %p132 = por %p130, %p131
      %p133 = scmp.ne.s32.totalorder %s122, %s123
      %p134 = scmp.eq.s32.totalorder %s24, 0
      %p135 = por %p133, %p134
      %p136 = scmp.ne.s32.totalorder %s122, %s123
      %p137 = scmp.eq.s32.totalorder %s25, 2
      %p138 = por %p136, %p137
      %p140 = scmp.ne.s32.totalorder %s123, %s139
      %p141 = scmp.eq.s32.totalorder %s25, 0
      %p142 = por %p140, %p141
      %s144 = sadd.s32 %s143, 1
      %p147 = scmp.eq.s32.totalorder %s19, 2
      %p148 = scmp.ne.s32.totalorder %s143, %s145
      %p149 = scmp.eq.s32.totalorder %s19, 0
      %p150 = por %p148, %p149
      %p151 = scmp.ne.s32.totalorder %s143, %s145
      %p152 = scmp.eq.s32.totalorder %s24, 2
      %p153 = por %p151, %p152
      %p154 = scmp.ne.s32.totalorder %s145, %s146
      %p155 = scmp.eq.s32.totalorder %s24, 0
      %p156 = por %p154, %p155
      %p157 = scmp.ne.s32.totalorder %s145, %s146
      %p158 = scmp.eq.s32.totalorder %s25, 2
      %p159 = por %p157, %p158
      %p161 = scmp.ne.s32.totalorder %s146, %s160
      %p162 = scmp.eq.s32.totalorder %s25, 0
      %p163 = por %p161, %p162
      %s164 = ssub.s32 %s26, %s38
      %p165 = scmp.eq.s32.totalorder %s164, 0
      %s167 = sadd.s32 %s166, 1
      %s168 = scalar_select %p165, %s166, %s167
      %p171 = pneg %p165
      %p172 = scmp.eq.s32.totalorder %s19, 2
      %p173 = por %p171, %p172
      %p174 = scmp.ne.s32.totalorder %s166, %s169
      %p175 = scmp.eq.s32.totalorder %s19, 0
      %p176 = por %p174, %p175
      %p177 = scmp.ne.s32.totalorder %s166, %s169
      %p178 = scmp.eq.s32.totalorder %s24, 2
      %p179 = por %p177, %p178
      %p180 = scmp.ne.s32.totalorder %s169, %s170
      %p181 = scmp.eq.s32.totalorder %s24, 0
      %p182 = por %p180, %p181
      %p183 = scmp.ne.s32.totalorder %s169, %s170
      %p184 = scmp.eq.s32.totalorder %s25, 2
      %p185 = por %p183, %p184
      %p187 = scmp.ne.s32.totalorder %s170, %s186
      %p188 = scmp.eq.s32.totalorder %s25, 0
      %p189 = por %p187, %p188
      %p190 = scmp.le.s32.totalorder 1, %s19
      %p191 = scmp.lt.s32.totalorder %s19, 4
      %p192 = pnand %p190, %p191
      %p193 = pneg %p192
      // Predicated region
      $region9: #{tpu_custom_call.1} parent=5 // pred_check
        _
      $region10: #{tpu_custom_call.1} parent=5 // pred_check_branch
        %195 = sbr.rel (%p192) target = $region12
      $region11: #{tpu_custom_call.1} parent=5 // pred_region
        %s196 = ssub.s32 %s19, 1
        // Predicated region
        $region13: #{tpu_custom_call.1} parent=11 // pred_check
          %p197 = pneg %p57
        $region14: #{tpu_custom_call.1} parent=11 // pred_check_branch
          %199 = sbr.rel (%p197) target = $region16
        $region15: #{tpu_custom_call.1} parent=11 // pred_region
          %s200 = smul.u32 2, %s28
          %s202 = ssub.s32 768, 768
          %203 = vsyncadd [#allocation4], %s202
          %s204 = smul.addr %s200, 3
          %s205 = smul.addr %s204, 128
          %s206 = scalar_lea.hbm %s0, %s205
          %s207 = sshll.u32 [#allocation3], 4
          %s208 = int_to_ptr.vmem [resolvable:$true] %s207
          %213 = dma.hbm_to_vmem [thread:$0]  %s206, 768, %s208, [#allocation4], 384, 384, 24
        $region16: #{tpu_custom_call.1} parent=11 // pred_fallthru
          _
        // Predicated region
        $region17: #{tpu_custom_call.1} parent=11 // pred_check
          %p214 = pneg %p156
        $region18: #{tpu_custom_call.1} parent=11 // pred_check_branch
          %216 = sbr.rel (%p214) target = $region20
        $region19: #{tpu_custom_call.1} parent=11 // pred_region
          %s218 = ssub.s32 48, 48
          %219 = vsyncadd [#allocation10], %s218
          %s221 = sshll.u32 [#allocation11], 4
          %s222 = int_to_ptr.vmem [resolvable:$true] %s221
          %224 = dma.hbm_to_vmem [thread:$0]  %s4, 48, %s222, [#allocation10]
        $region20: #{tpu_custom_call.1} parent=11 // pred_fallthru
          _
      $region12: #{tpu_custom_call.1} parent=5 // pred_fallthru
        _
      %p225 = scmp.lt.s32.totalorder %s19, 3
      // Predicated region
      $region21: #{tpu_custom_call.1} parent=5 // pred_check
        %p226 = pneg %p225
      $region22: #{tpu_custom_call.1} parent=5 // pred_check_branch
        %228 = sbr.rel (%p226) target = $region24
      $region23: #{tpu_custom_call.1} parent=5 // pred_region
        // Predicated region
        $region25: #{tpu_custom_call.1} parent=23 // pred_check
          %p229 = pneg %p77
        $region26: #{tpu_custom_call.1} parent=23 // pred_check_branch
          %231 = sbr.rel (%p229) target = $region28
        $region27: #{tpu_custom_call.1} parent=23 // pred_region
          %s232 = sand.u32 %s19, 1
          %s233 = scalar_lea.sflag [#allocation7], %s232
          %s234 = sand.u32 %s67, 1
          %s235 = smul.addr %s234, 768
          %s236 = scalar_lea.vmem [#allocation6], %s235
          %s237 = smul.u32 4, %s27
          %s239 = ssub.s32 12288, 12288
          %240 = vsyncadd %s233, %s239
          %s241 = smul.addr %s237, 64
          %s242 = scalar_lea.hbm %s1, %s241
          %s243 = sshll.u32 %s236, 4
          %s244 = int_to_ptr.vmem [resolvable:$true] %s243
          %249 = dma.hbm_to_vmem [thread:$0]  %s242, 12288, %s244, %s233, 768, 256, 16
        $region28: #{tpu_custom_call.1} parent=23 // pred_fallthru
          _
        // Predicated region
        $region29: #{tpu_custom_call.1} parent=23 // pred_check
          %p250 = pneg %p103
        $region30: #{tpu_custom_call.1} parent=23 // pred_check_branch
          %252 = sbr.rel (%p250) target = $region32
        $region31: #{tpu_custom_call.1} parent=23 // pred_region
          %s253 = sand.u32 %s19, 1
          %s254 = scalar_lea.sflag [#allocation7], %s253
          %s255 = sand.u32 %s93, 1
          %s256 = smul.addr %s255, 4
          %s257 = scalar_lea.vmem [#allocation8], %s256
          %s258 = smul.u32 4, %s27
          %s260 = ssub.s32 64, 64
          %261 = vsyncadd %s254, %s260
          %s262 = smul.addr %s258, 16
          %s263 = scalar_lea.hbm %s2, %s262
          %s265 = sshll.u32 %s257, 4
          %s266 = int_to_ptr.vmem [resolvable:$true] %s265
          %268 = dma.hbm_to_vmem [thread:$0]  %s263, 64, %s266, %s254
        $region32: #{tpu_custom_call.1} parent=23 // pred_fallthru
          _
        // Predicated region
        $region33: #{tpu_custom_call.1} parent=23 // pred_check
          %p269 = pneg %p129
        $region34: #{tpu_custom_call.1} parent=23 // pred_check_branch
          %271 = sbr.rel (%p269) target = $region36
        $region35: #{tpu_custom_call.1} parent=23 // pred_region
          %s272 = sand.u32 %s19, 1
          %s273 = scalar_lea.sflag [#allocation10], %s272
          %s274 = sand.u32 %s119, 1
          %s275 = smul.addr %s274, 768
          %s276 = scalar_lea.vmem [#allocation9], %s275
          %s277 = smul.u32 64, %s27
          %s279 = ssub.s32 12288, 12288
          %280 = vsyncadd %s273, %s279
          %s281 = smul.addr %s277, 3
          %s282 = smul.addr %s281, 64
          %s283 = scalar_lea.hbm %s3, %s282
          %s284 = sshll.u32 %s276, 4
          %s285 = int_to_ptr.vmem [resolvable:$true] %s284
          %290 = dma.hbm_to_vmem [thread:$0]  %s283, 12288, %s285, %s273, 192, 192, 12
        $region36: #{tpu_custom_call.1} parent=23 // pred_fallthru
          _
      $region24: #{tpu_custom_call.1} parent=5 // pred_fallthru
        _
      %p291 = scmp.le.s32.totalorder 1, %s19
      %p292 = scmp.lt.s32.totalorder %s19, 4
      %p293 = pnand %p291, %p292
      %p294 = pneg %p293
      // Predicated region
      $region37: #{tpu_custom_call.1} parent=5 // pred_check
        _
      $region38: #{tpu_custom_call.1} parent=5 // pred_check_branch
        %296 = sbr.rel (%p293) target = $region40
      $region39: #{tpu_custom_call.1} parent=5 // pred_region
        %s297 = ssub.s32 %s19, 1
        // Predicated region
        $region41: #{tpu_custom_call.1} parent=39 // pred_check
          %p298 = pneg %p57
        $region42: #{tpu_custom_call.1} parent=39 // pred_check_branch
          %300 = sbr.rel (%p298) target = $region44
        $region43: #{tpu_custom_call.1} parent=39 // pred_region
          %301 = dma.done [#allocation4], 768
        $region44: #{tpu_custom_call.1} parent=39 // pred_fallthru
          _
        %s302 = sand.u32 %s24, 1
        %s303 = scalar_lea.sflag [#allocation7], %s302
        %s304 = sand.u32 %s70, 1
        %s305 = smul.addr %s304, 768
        %s306 = scalar_lea.vmem [#allocation6], %s305
        // Predicated region
        $region45: #{tpu_custom_call.1} parent=39 // pred_check
          %p307 = pneg %p83
        $region46: #{tpu_custom_call.1} parent=39 // pred_check_branch
          %309 = sbr.rel (%p307) target = $region48
        $region47: #{tpu_custom_call.1} parent=39 // pred_region
          %310 = dma.done %s303, 12288
        $region48: #{tpu_custom_call.1} parent=39 // pred_fallthru
          _
        %s311 = sand.u32 %s24, 1
        %s312 = scalar_lea.sflag [#allocation7], %s311
        %s313 = sand.u32 %s96, 1
        %s314 = smul.addr %s313, 4
        %s315 = scalar_lea.vmem [#allocation8], %s314
        // Predicated region
        $region49: #{tpu_custom_call.1} parent=39 // pred_check
          %p316 = pneg %p109
        $region50: #{tpu_custom_call.1} parent=39 // pred_check_branch
          %318 = sbr.rel (%p316) target = $region52
        $region51: #{tpu_custom_call.1} parent=39 // pred_region
          %319 = dma.done %s312, 64
        $region52: #{tpu_custom_call.1} parent=39 // pred_fallthru
          _
        %s320 = sand.u32 %s24, 1
        %s321 = scalar_lea.sflag [#allocation10], %s320
        %s322 = sand.u32 %s122, 1
        %s323 = smul.addr %s322, 768
        %s324 = scalar_lea.vmem [#allocation9], %s323
        // Predicated region
        $region53: #{tpu_custom_call.1} parent=39 // pred_check
          %p325 = pneg %p135
        $region54: #{tpu_custom_call.1} parent=39 // pred_check_branch
          %327 = sbr.rel (%p325) target = $region56
        $region55: #{tpu_custom_call.1} parent=39 // pred_region
          %328 = dma.done %s321, 12288
        $region56: #{tpu_custom_call.1} parent=39 // pred_fallthru
          _
        // Predicated region
        $region57: #{tpu_custom_call.1} parent=39 // pred_check
          %p329 = pneg %p156
        $region58: #{tpu_custom_call.1} parent=39 // pred_check_branch
          %331 = sbr.rel (%p329) target = $region60
        $region59: #{tpu_custom_call.1} parent=39 // pred_region
          %332 = dma.done [#allocation10], 48
        $region60: #{tpu_custom_call.1} parent=39 // pred_fallthru
          _
        %p333 = pneg %p57
        %p334 = pneg %p54
        %s335 = sand.u32 %s24, 1
        %s336 = scalar_lea.sflag [#allocation7], %s335
        %s337 = sand.u32 %s70, 1
        %s338 = smul.addr %s337, 768
        %s339 = scalar_lea.vmem [#allocation6], %s338
        %p340 = pneg %p83
        %p341 = pneg %p80
        %s342 = sand.u32 %s24, 1
        %s343 = scalar_lea.sflag [#allocation7], %s342
        %s344 = sand.u32 %s96, 1
        %s345 = smul.addr %s344, 4
        %s346 = scalar_lea.vmem [#allocation8], %s345
        %p347 = pneg %p109
        %p348 = pneg %p106
        %s349 = sand.u32 %s24, 1
        %s350 = scalar_lea.sflag [#allocation10], %s349
        %s351 = sand.u32 %s122, 1
        %s352 = smul.addr %s351, 768
        %s353 = scalar_lea.vmem [#allocation9], %s352
        %p354 = pneg %p135
        %p355 = pneg %p132
        %p356 = pneg %p156
        %p357 = pneg %p153
        %p358 = pneg %p182
        %p359 = pneg %p179
        %s360 = smul.u32 2, %s28
        %s361 = smul.u32 4, %s29
        %s362 = smul.u32 4, %s29
        %s363 = smul.u32 64, %s29
        %s364 = smul.u32 2, %s28
        %p366 = scmp.eq.s32.totalorder %s29, 0
        // Predicated region
        $region61: #{tpu_custom_call.1} parent=39 // pred_check
          %p367 = pneg %p366
        $region62: #{tpu_custom_call.1} parent=39 // pred_check_branch
          %369 = sbr.rel (%p367) target = $region64
        $region63: #{tpu_custom_call.1} parent=39 // pred_region
          %370 = vst [vmem:[#allocation2] sm:$0xff] 0.0
          %371 = vst [vmem:[#allocation2 + $0x8] sm:$0xff] 0.0
          %372 = vst [vmem:[#allocation2 + $0x10] sm:$0xff] 0.0
          %373 = vst [vmem:[#allocation2 + $0x18] sm:$0xff] 0.0
          %374 = vst [vmem:[#allocation2 + $0x20] sm:$0xff] 0.0
          %375 = vst [vmem:[#allocation2 + $0x28] sm:$0xff] 0.0
        $region64: #{tpu_custom_call.1} parent=39 // pred_fallthru
          _
        %v376 = vld [vmem:[#allocation3] sm:$0xff]
        %v377 = vld [vmem:[#allocation3 + $0x8] sm:$0xff]
        %v378 = vld [vmem:[#allocation3 + $0x10] sm:$0xff]
        %v379 = vld [vmem:[#allocation3 + $0x18] sm:$0xff]
        %v380 = vld [vmem:[#allocation3 + $0x20] sm:$0xff]
        %v381 = vld [vmem:[#allocation3 + $0x28] sm:$0xff]
        %v382 = vpack.c.bf16 %v379, %v376
        %v383 = vpack.c.bf16 %v380, %v377
        %v384 = vpack.c.bf16 %v381, %v378
        %v385 = vld [vmem:[%s306] sm:$0xff]
        %v386 = vld [vmem:[%s306 + $0x8] sm:$0xff]
        %v387 = vld [vmem:[%s306 + $0x10] sm:$0xff]
        %v388 = vld [vmem:[%s306 + $0x18] sm:$0xff]
        %v389 = vld [vmem:[%s306 + $0x20] sm:$0xff]
        %v390 = vld [vmem:[%s306 + $0x28] sm:$0xff]
        %v391 = vld [vmem:[%s306 + $0x30] sm:$0xff]
        %v392 = vld [vmem:[%s306 + $0x38] sm:$0xff]
        %v393 = vld [vmem:[%s306 + $0x40] sm:$0xff]
        %v394 = vld [vmem:[%s306 + $0x48] sm:$0xff]
        %v395 = vld [vmem:[%s306 + $0x50] sm:$0xff]
        %v396 = vld [vmem:[%s306 + $0x58] sm:$0xff]
        %v397 = vld [vmem:[%s306 + $0x60] sm:$0xff]
        %v398 = vld [vmem:[%s306 + $0x68] sm:$0xff]
        %v399 = vld [vmem:[%s306 + $0x70] sm:$0xff]
        %v400 = vld [vmem:[%s306 + $0x78] sm:$0xff]
        %v401 = vld [vmem:[%s306 + $0x80] sm:$0xff]
        %v402 = vld [vmem:[%s306 + $0x88] sm:$0xff]
        %v403 = vld [vmem:[%s306 + $0x90] sm:$0xff]
        %v404 = vld [vmem:[%s306 + $0x98] sm:$0xff]
        %v405 = vld [vmem:[%s306 + $0xa0] sm:$0xff]
        %v406 = vld [vmem:[%s306 + $0xa8] sm:$0xff]
        %v407 = vld [vmem:[%s306 + $0xb0] sm:$0xff]
        %v408 = vld [vmem:[%s306 + $0xb8] sm:$0xff]
        %v409 = vld [vmem:[%s306 + $0xc0] sm:$0xff]
        %v410 = vld [vmem:[%s306 + $0xc8] sm:$0xff]
        %v411 = vld [vmem:[%s306 + $0xd0] sm:$0xff]
        %v412 = vld [vmem:[%s306 + $0xd8] sm:$0xff]
        %v413 = vld [vmem:[%s306 + $0xe0] sm:$0xff]
        %v414 = vld [vmem:[%s306 + $0xe8] sm:$0xff]
        %v415 = vld [vmem:[%s306 + $0xf0] sm:$0xff]
        %v416 = vld [vmem:[%s306 + $0xf8] sm:$0xff]
        %v417 = vld [vmem:[%s306 + $0x100] sm:$0xff]
        %v418 = vld [vmem:[%s306 + $0x108] sm:$0xff]
        %v419 = vld [vmem:[%s306 + $0x110] sm:$0xff]
        %v420 = vld [vmem:[%s306 + $0x118] sm:$0xff]
        %v421 = vld [vmem:[%s306 + $0x120] sm:$0xff]
        %v422 = vld [vmem:[%s306 + $0x128] sm:$0xff]
        %v423 = vld [vmem:[%s306 + $0x130] sm:$0xff]
        %v424 = vld [vmem:[%s306 + $0x138] sm:$0xff]
        %v425 = vld [vmem:[%s306 + $0x140] sm:$0xff]
        %v426 = vld [vmem:[%s306 + $0x148] sm:$0xff]
        %v427 = vld [vmem:[%s306 + $0x150] sm:$0xff]
        %v428 = vld [vmem:[%s306 + $0x158] sm:$0xff]
        %v429 = vld [vmem:[%s306 + $0x160] sm:$0xff]
        %v430 = vld [vmem:[%s306 + $0x168] sm:$0xff]
        %v431 = vld [vmem:[%s306 + $0x170] sm:$0xff]
        %v432 = vld [vmem:[%s306 + $0x178] sm:$0xff]
        %v433 = vld [vmem:[%s306 + $0x180] sm:$0xff]
        %v434 = vld [vmem:[%s306 + $0x188] sm:$0xff]
        %v435 = vld [vmem:[%s306 + $0x190] sm:$0xff]
        %v436 = vld [vmem:[%s306 + $0x198] sm:$0xff]
        %v437 = vld [vmem:[%s306 + $0x1a0] sm:$0xff]
        %v438 = vld [vmem:[%s306 + $0x1a8] sm:$0xff]
        %v439 = vld [vmem:[%s306 + $0x1b0] sm:$0xff]
        %v440 = vld [vmem:[%s306 + $0x1b8] sm:$0xff]
        %v441 = vld [vmem:[%s306 + $0x1c0] sm:$0xff]
        %v442 = vld [vmem:[%s306 + $0x1c8] sm:$0xff]
        %v443 = vld [vmem:[%s306 + $0x1d0] sm:$0xff]
        %v444 = vld [vmem:[%s306 + $0x1d8] sm:$0xff]
        %v445 = vld [vmem:[%s306 + $0x1e0] sm:$0xff]
        %v446 = vld [vmem:[%s306 + $0x1e8] sm:$0xff]
        %v447 = vld [vmem:[%s306 + $0x1f0] sm:$0xff]
        %v448 = vld [vmem:[%s306 + $0x1f8] sm:$0xff]
        %v449 = vld [vmem:[%s306 + $0x200] sm:$0xff]
        %v450 = vld [vmem:[%s306 + $0x208] sm:$0xff]
        %v451 = vld [vmem:[%s306 + $0x210] sm:$0xff]
        %v452 = vld [vmem:[%s306 + $0x218] sm:$0xff]
        %v453 = vld [vmem:[%s306 + $0x220] sm:$0xff]
        %v454 = vld [vmem:[%s306 + $0x228] sm:$0xff]
        %v455 = vld [vmem:[%s306 + $0x230] sm:$0xff]
        %v456 = vld [vmem:[%s306 + $0x238] sm:$0xff]
        %v457 = vld [vmem:[%s306 + $0x240] sm:$0xff]
        %v458 = vld [vmem:[%s306 + $0x248] sm:$0xff]
        %v459 = vld [vmem:[%s306 + $0x250] sm:$0xff]
        %v460 = vld [vmem:[%s306 + $0x258] sm:$0xff]
        %v461 = vld [vmem:[%s306 + $0x260] sm:$0xff]
        %v462 = vld [vmem:[%s306 + $0x268] sm:$0xff]
        %v463 = vld [vmem:[%s306 + $0x270] sm:$0xff]
        %v464 = vld [vmem:[%s306 + $0x278] sm:$0xff]
        %v465 = vld [vmem:[%s306 + $0x280] sm:$0xff]
        %v466 = vld [vmem:[%s306 + $0x288] sm:$0xff]
        %v467 = vld [vmem:[%s306 + $0x290] sm:$0xff]
        %v468 = vld [vmem:[%s306 + $0x298] sm:$0xff]
        %v469 = vld [vmem:[%s306 + $0x2a0] sm:$0xff]
        %v470 = vld [vmem:[%s306 + $0x2a8] sm:$0xff]
        %v471 = vld [vmem:[%s306 + $0x2b0] sm:$0xff]
        %v472 = vld [vmem:[%s306 + $0x2b8] sm:$0xff]
        %v473 = vld [vmem:[%s306 + $0x2c0] sm:$0xff]
        %v474 = vld [vmem:[%s306 + $0x2c8] sm:$0xff]
        %v475 = vld [vmem:[%s306 + $0x2d0] sm:$0xff]
        %v476 = vld [vmem:[%s306 + $0x2d8] sm:$0xff]
        %v477 = vld [vmem:[%s306 + $0x2e0] sm:$0xff]
        %v478 = vld [vmem:[%s306 + $0x2e8] sm:$0xff]
        %v479 = vld [vmem:[%s306 + $0x2f0] sm:$0xff]
        %v480 = vld [vmem:[%s306 + $0x2f8] sm:$0xff]
        %v481 = vld [vmem:[%s315] sm:$0xf]
        %v483 = vlaneseq
        %v484 = vshrl.u32 %v483, 7
        %v485 = vsub.s32 0, %v484
        %v486 = vrot.slane %v481, %v485
        %v487 = vlaneseq
        %v488 = vshrl.u32 %v487, 7
        %v489 = vsub.s32 1, %v488
        %v490 = vrot.slane %v481, %v489
        %v491 = vlaneseq
        %v492 = vshrl.u32 %v491, 7
        %v493 = vsub.s32 2, %v492
        %v494 = vrot.slane %v481, %v493
        %v495 = vlaneseq
        %v496 = vshrl.u32 %v495, 7
        %v497 = vsub.s32 3, %v496
        %v498 = vrot.slane %v481, %v497
        %v599 = vunpack.c.l.b16 %v385
        %v600 = vunpack.c.h.b16 %v385
        %v601 = vunpack.c.l.b16 %v386
        %v602 = vunpack.c.h.b16 %v386
        %v603 = vunpack.c.l.b16 %v387
        %v604 = vunpack.c.h.b16 %v387
        %v605 = vunpack.c.l.b16 %v388
        %v606 = vunpack.c.h.b16 %v388
        %v607 = vunpack.c.l.b16 %v389
        %v608 = vunpack.c.h.b16 %v389
        %v609 = vunpack.c.l.b16 %v390
        %v610 = vunpack.c.h.b16 %v390
        %v611 = vunpack.c.l.b16 %v391
        %v612 = vunpack.c.h.b16 %v391
        %v613 = vunpack.c.l.b16 %v392
        %v614 = vunpack.c.h.b16 %v392
        %v615 = vunpack.c.l.b16 %v393
        %v616 = vunpack.c.h.b16 %v393
        %v617 = vunpack.c.l.b16 %v394
        %v618 = vunpack.c.h.b16 %v394
        %v619 = vunpack.c.l.b16 %v395
        %v620 = vunpack.c.h.b16 %v395
        %v621 = vunpack.c.l.b16 %v396
        %v622 = vunpack.c.h.b16 %v396
        %v623 = vunpack.c.l.b16 %v397
        %v624 = vunpack.c.h.b16 %v397
        %v625 = vunpack.c.l.b16 %v398
        %v626 = vunpack.c.h.b16 %v398
        %v627 = vunpack.c.l.b16 %v399
        %v628 = vunpack.c.h.b16 %v399
        %v629 = vunpack.c.l.b16 %v400
        %v630 = vunpack.c.h.b16 %v400
        %v631 = vunpack.c.l.b16 %v401
        %v632 = vunpack.c.h.b16 %v401
        %v633 = vunpack.c.l.b16 %v402
        %v634 = vunpack.c.h.b16 %v402
        %v635 = vunpack.c.l.b16 %v403
        %v636 = vunpack.c.h.b16 %v403
        %v637 = vunpack.c.l.b16 %v404
        %v638 = vunpack.c.h.b16 %v404
        %v639 = vunpack.c.l.b16 %v405
        %v640 = vunpack.c.h.b16 %v405
        %v641 = vunpack.c.l.b16 %v406
        %v642 = vunpack.c.h.b16 %v406
        %v643 = vunpack.c.l.b16 %v407
        %v644 = vunpack.c.h.b16 %v407
        %v645 = vunpack.c.l.b16 %v408
        %v646 = vunpack.c.h.b16 %v408
        %v647 = vunpack.c.l.b16 %v409
        %v648 = vunpack.c.h.b16 %v409
        %v649 = vunpack.c.l.b16 %v410
        %v650 = vunpack.c.h.b16 %v410
        %v651 = vunpack.c.l.b16 %v411
        %v652 = vunpack.c.h.b16 %v411
        %v653 = vunpack.c.l.b16 %v412
        %v654 = vunpack.c.h.b16 %v412
        %v655 = vunpack.c.l.b16 %v413
        %v656 = vunpack.c.h.b16 %v413
        %v657 = vunpack.c.l.b16 %v414
        %v658 = vunpack.c.h.b16 %v414
        %v659 = vunpack.c.l.b16 %v415
        %v660 = vunpack.c.h.b16 %v415
        %v661 = vunpack.c.l.b16 %v416
        %v662 = vunpack.c.h.b16 %v416
        %v663 = vunpack.c.l.b16 %v417
        %v664 = vunpack.c.h.b16 %v417
        %v665 = vunpack.c.l.b16 %v418
        %v666 = vunpack.c.h.b16 %v418
        %v667 = vunpack.c.l.b16 %v419
        %v668 = vunpack.c.h.b16 %v419
        %v669 = vunpack.c.l.b16 %v420
        %v670 = vunpack.c.h.b16 %v420
        %v671 = vunpack.c.l.b16 %v421
        %v672 = vunpack.c.h.b16 %v421
        %v673 = vunpack.c.l.b16 %v422
        %v674 = vunpack.c.h.b16 %v422
        %v675 = vunpack.c.l.b16 %v423
        %v676 = vunpack.c.h.b16 %v423
        %v677 = vunpack.c.l.b16 %v424
        %v678 = vunpack.c.h.b16 %v424
        %v679 = vunpack.c.l.b16 %v425
        %v680 = vunpack.c.h.b16 %v425
        %v681 = vunpack.c.l.b16 %v426
        %v682 = vunpack.c.h.b16 %v426
        %v683 = vunpack.c.l.b16 %v427
        %v684 = vunpack.c.h.b16 %v427
        %v685 = vunpack.c.l.b16 %v428
        %v686 = vunpack.c.h.b16 %v428
        %v687 = vunpack.c.l.b16 %v429
        %v688 = vunpack.c.h.b16 %v429
        %v689 = vunpack.c.l.b16 %v430
        %v690 = vunpack.c.h.b16 %v430
        %v691 = vunpack.c.l.b16 %v431
        %v692 = vunpack.c.h.b16 %v431
        %v693 = vunpack.c.l.b16 %v432
        %v694 = vunpack.c.h.b16 %v432
        %v695 = vunpack.c.l.b16 %v433
        %v696 = vunpack.c.h.b16 %v433
        %v697 = vunpack.c.l.b16 %v434
        %v698 = vunpack.c.h.b16 %v434
        %v699 = vunpack.c.l.b16 %v435
        %v700 = vunpack.c.h.b16 %v435
        %v701 = vunpack.c.l.b16 %v436
        %v702 = vunpack.c.h.b16 %v436
        %v703 = vunpack.c.l.b16 %v437
        %v704 = vunpack.c.h.b16 %v437
        %v705 = vunpack.c.l.b16 %v438
        %v706 = vunpack.c.h.b16 %v438
        %v707 = vunpack.c.l.b16 %v439
        %v708 = vunpack.c.h.b16 %v439
        %v709 = vunpack.c.l.b16 %v440
        %v710 = vunpack.c.h.b16 %v440
        %v711 = vunpack.c.l.b16 %v441
        %v712 = vunpack.c.h.b16 %v441
        %v713 = vunpack.c.l.b16 %v442
        %v714 = vunpack.c.h.b16 %v442
        %v715 = vunpack.c.l.b16 %v443
        %v716 = vunpack.c.h.b16 %v443
        %v717 = vunpack.c.l.b16 %v444
        %v718 = vunpack.c.h.b16 %v444
        %v719 = vunpack.c.l.b16 %v445
        %v720 = vunpack.c.h.b16 %v445
        %v721 = vunpack.c.l.b16 %v446
        %v722 = vunpack.c.h.b16 %v446
        %v723 = vunpack.c.l.b16 %v447
        %v724 = vunpack.c.h.b16 %v447
        %v725 = vunpack.c.l.b16 %v448
        %v726 = vunpack.c.h.b16 %v448
        %v727 = vunpack.c.l.b16 %v449
        %v728 = vunpack.c.h.b16 %v449
        %v729 = vunpack.c.l.b16 %v450
        %v730 = vunpack.c.h.b16 %v450
        %v731 = vunpack.c.l.b16 %v451
        %v732 = vunpack.c.h.b16 %v451
        %v733 = vunpack.c.l.b16 %v452
        %v734 = vunpack.c.h.b16 %v452
        %v735 = vunpack.c.l.b16 %v453
        %v736 = vunpack.c.h.b16 %v453
        %v737 = vunpack.c.l.b16 %v454
        %v738 = vunpack.c.h.b16 %v454
        %v739 = vunpack.c.l.b16 %v455
        %v740 = vunpack.c.h.b16 %v455
        %v741 = vunpack.c.l.b16 %v456
        %v742 = vunpack.c.h.b16 %v456
        %v743 = vunpack.c.l.b16 %v457
        %v744 = vunpack.c.h.b16 %v457
        %v745 = vunpack.c.l.b16 %v458
        %v746 = vunpack.c.h.b16 %v458
        %v747 = vunpack.c.l.b16 %v459
        %v748 = vunpack.c.h.b16 %v459
        %v749 = vunpack.c.l.b16 %v460
        %v750 = vunpack.c.h.b16 %v460
        %v751 = vunpack.c.l.b16 %v461
        %v752 = vunpack.c.h.b16 %v461
        %v753 = vunpack.c.l.b16 %v462
        %v754 = vunpack.c.h.b16 %v462
        %v755 = vunpack.c.l.b16 %v463
        %v756 = vunpack.c.h.b16 %v463
        %v757 = vunpack.c.l.b16 %v464
        %v758 = vunpack.c.h.b16 %v464
        %v759 = vunpack.c.l.b16 %v465
        %v760 = vunpack.c.h.b16 %v465
        %v761 = vunpack.c.l.b16 %v466
        %v762 = vunpack.c.h.b16 %v466
        %v763 = vunpack.c.l.b16 %v467
        %v764 = vunpack.c.h.b16 %v467
        %v765 = vunpack.c.l.b16 %v468
        %v766 = vunpack.c.h.b16 %v468
        %v767 = vunpack.c.l.b16 %v469
        %v768 = vunpack.c.h.b16 %v469
        %v769 = vunpack.c.l.b16 %v470
        %v770 = vunpack.c.h.b16 %v470
        %v771 = vunpack.c.l.b16 %v471
        %v772 = vunpack.c.h.b16 %v471
        %v773 = vunpack.c.l.b16 %v472
        %v774 = vunpack.c.h.b16 %v472
        %v775 = vunpack.c.l.b16 %v473
        %v776 = vunpack.c.h.b16 %v473
        %v777 = vunpack.c.l.b16 %v474
        %v778 = vunpack.c.h.b16 %v474
        %v779 = vunpack.c.l.b16 %v475
        %v780 = vunpack.c.h.b16 %v475
        %v781 = vunpack.c.l.b16 %v476
        %v782 = vunpack.c.h.b16 %v476
        %v783 = vunpack.c.l.b16 %v477
        %v784 = vunpack.c.h.b16 %v477
        %v785 = vunpack.c.l.b16 %v478
        %v786 = vunpack.c.h.b16 %v478
        %v787 = vunpack.c.l.b16 %v479
        %v788 = vunpack.c.h.b16 %v479
        %v789 = vunpack.c.l.b16 %v480
        %v790 = vunpack.c.h.b16 %v480
        %v791 = vpack.c.b16 %v603, %v599
        %v792 = vpack.c.b16 %v604, %v600
        %v793 = vpack.c.b16 %v605, %v601
        %v794 = vpack.c.b16 %v606, %v602
        %v795 = vpack.c.b16 %v611, %v607
        %v796 = vpack.c.b16 %v612, %v608
        %v797 = vpack.c.b16 %v613, %v609
        %v798 = vpack.c.b16 %v614, %v610
        %v799 = vpack.c.b16 %v619, %v615
        %v800 = vpack.c.b16 %v620, %v616
        %v801 = vpack.c.b16 %v621, %v617
        %v802 = vpack.c.b16 %v622, %v618
        %v803 = vpack.c.b16 %v627, %v623
        %v804 = vpack.c.b16 %v628, %v624
        %v805 = vpack.c.b16 %v629, %v625
        %v806 = vpack.c.b16 %v630, %v626
        %v807 = vpack.c.b16 %v635, %v631
        %v808 = vpack.c.b16 %v636, %v632
        %v809 = vpack.c.b16 %v637, %v633
        %v810 = vpack.c.b16 %v638, %v634
        %v811 = vpack.c.b16 %v643, %v639
        %v812 = vpack.c.b16 %v644, %v640
        %v813 = vpack.c.b16 %v645, %v641
        %v814 = vpack.c.b16 %v646, %v642
        %v815 = vpack.c.b16 %v651, %v647
        %v816 = vpack.c.b16 %v652, %v648
        %v817 = vpack.c.b16 %v653, %v649
        %v818 = vpack.c.b16 %v654, %v650
        %v819 = vpack.c.b16 %v659, %v655
        %v820 = vpack.c.b16 %v660, %v656
        %v821 = vpack.c.b16 %v661, %v657
        %v822 = vpack.c.b16 %v662, %v658
        %v823 = vpack.c.b16 %v667, %v663
        %v824 = vpack.c.b16 %v668, %v664
        %v825 = vpack.c.b16 %v669, %v665
        %v826 = vpack.c.b16 %v670, %v666
        %v827 = vpack.c.b16 %v675, %v671
        %v828 = vpack.c.b16 %v676, %v672
        %v829 = vpack.c.b16 %v677, %v673
        %v830 = vpack.c.b16 %v678, %v674
        %v831 = vpack.c.b16 %v683, %v679
        %v832 = vpack.c.b16 %v684, %v680
        %v833 = vpack.c.b16 %v685, %v681
        %v834 = vpack.c.b16 %v686, %v682
        %v835 = vpack.c.b16 %v691, %v687
        %v836 = vpack.c.b16 %v692, %v688
        %v837 = vpack.c.b16 %v693, %v689
        %v838 = vpack.c.b16 %v694, %v690
        %v839 = vpack.c.b16 %v699, %v695
        %v840 = vpack.c.b16 %v700, %v696
        %v841 = vpack.c.b16 %v701, %v697
        %v842 = vpack.c.b16 %v702, %v698
        %v843 = vpack.c.b16 %v707, %v703
        %v844 = vpack.c.b16 %v708, %v704
        %v845 = vpack.c.b16 %v709, %v705
        %v846 = vpack.c.b16 %v710, %v706
        %v847 = vpack.c.b16 %v715, %v711
        %v848 = vpack.c.b16 %v716, %v712
        %v849 = vpack.c.b16 %v717, %v713
        %v850 = vpack.c.b16 %v718, %v714
        %v851 = vpack.c.b16 %v723, %v719
        %v852 = vpack.c.b16 %v724, %v720
        %v853 = vpack.c.b16 %v725, %v721
        %v854 = vpack.c.b16 %v726, %v722
        %v855 = vpack.c.b16 %v731, %v727
        %v856 = vpack.c.b16 %v732, %v728
        %v857 = vpack.c.b16 %v733, %v729
        %v858 = vpack.c.b16 %v734, %v730
        %v859 = vpack.c.b16 %v739, %v735
        %v860 = vpack.c.b16 %v740, %v736
        %v861 = vpack.c.b16 %v741, %v737
        %v862 = vpack.c.b16 %v742, %v738
        %v863 = vpack.c.b16 %v747, %v743
        %v864 = vpack.c.b16 %v748, %v744
        %v865 = vpack.c.b16 %v749, %v745
        %v866 = vpack.c.b16 %v750, %v746
        %v867 = vpack.c.b16 %v755, %v751
        %v868 = vpack.c.b16 %v756, %v752
        %v869 = vpack.c.b16 %v757, %v753
        %v870 = vpack.c.b16 %v758, %v754
        %v871 = vpack.c.b16 %v763, %v759
        %v872 = vpack.c.b16 %v764, %v760
        %v873 = vpack.c.b16 %v765, %v761
        %v874 = vpack.c.b16 %v766, %v762
        %v875 = vpack.c.b16 %v771, %v767
        %v876 = vpack.c.b16 %v772, %v768
        %v877 = vpack.c.b16 %v773, %v769
        %v878 = vpack.c.b16 %v774, %v770
        %v879 = vpack.c.b16 %v779, %v775
        %v880 = vpack.c.b16 %v780, %v776
        %v881 = vpack.c.b16 %v781, %v777
        %v882 = vpack.c.b16 %v782, %v778
        %v883 = vpack.c.b16 %v787, %v783
        %v884 = vpack.c.b16 %v788, %v784
        %v885 = vpack.c.b16 %v789, %v785
        %v886 = vpack.c.b16 %v790, %v786
        %983 = vmatprep.subr.bf16.mxu0 %v792
        %984 = vmatpush1.bf16.msra.mxu0 %v791
        %985 = vmatprep.subr.bf16.mxu0 %v796
        %986 = vmatpush1.bf16.msra.mxu0 %v795
        %987 = vmatprep.subr.bf16.mxu0 %v800
        %988 = vmatpush1.bf16.msra.mxu0 %v799
        %989 = vmatprep.subr.bf16.mxu0 %v804
        %990 = vmatpush1.bf16.msra.mxu0 %v803
        %991 = vmatprep.subr.bf16.mxu0 %v808
        %992 = vmatpush1.bf16.msra.mxu0 %v807
        %993 = vmatprep.subr.bf16.mxu0 %v812
        %994 = vmatpush1.bf16.msra.mxu0 %v811
        %995 = vmatprep.subr.bf16.mxu0 %v816
        %996 = vmatpush1.bf16.msra.mxu0 %v815
        %997 = vmatprep.subr.bf16.mxu0 %v820
        %998 = vmatpush1.bf16.msra.mxu0 %v819
        %999 = vmatprep.subr.bf16.mxu0 %v824
        %1000 = vmatpush1.bf16.msra.mxu0 %v823
        %1001 = vmatprep.subr.bf16.mxu0 %v828
        %1002 = vmatpush1.bf16.msra.mxu0 %v827
        %1003 = vmatprep.subr.bf16.mxu0 %v832
        %1004 = vmatpush1.bf16.msra.mxu0 %v831
        %1005 = vmatprep.subr.bf16.mxu0 %v836
        %1006 = vmatpush1.bf16.msra.mxu0 %v835
        %1007 = vmatprep.subr.bf16.mxu0 %v840
        %1008 = vmatpush1.bf16.msra.mxu0 %v839
        %1009 = vmatprep.subr.bf16.mxu0 %v844
        %1010 = vmatpush1.bf16.msra.mxu0 %v843
        %1011 = vmatprep.subr.bf16.mxu0 %v848
        %1012 = vmatpush1.bf16.msra.mxu0 %v847
        %1013 = vmatprep.subr.bf16.mxu0 %v852
        %1014 = vmatpush1.bf16.msra.mxu0 %v851
        %1015 = vmatprep.mubr.bf16.mxu0 %v383
        %1016 = vmatmul.mubr.bf16.gmra.mrb[0].mxu0 %v382
        %v1017 = vpop.f32.mrb[0].mxu0
        %v1018 = vadd.f32 %v486, %v1017
        %v1019 = vpop.f32.mrb[0].mxu0
        %v1020 = vadd.f32 %v490, %v1019
        %v1021 = vpop.f32.mrb[0].mxu0
        %v1022 = vadd.f32 %v486, %v1021
        %v1023 = vpop.f32.mrb[0].mxu0
        %v1024 = vadd.f32 %v490, %v1023
        %1025 = vdwg.mxu0
        %1026 = vmatprep.subr.bf16.mxu0 %v856
        %1027 = vmatpush1.bf16.msra.mxu0 %v855
        %1028 = vmatprep.subr.bf16.mxu0 %v860
        %1029 = vmatpush1.bf16.msra.mxu0 %v859
        %1030 = vmatprep.subr.bf16.mxu0 %v864
        %1031 = vmatpush1.bf16.msra.mxu0 %v863
        %1032 = vmatprep.subr.bf16.mxu0 %v868
        %1033 = vmatpush1.bf16.msra.mxu0 %v867
        %1034 = vmatprep.subr.bf16.mxu0 %v872
        %1035 = vmatpush1.bf16.msra.mxu0 %v871
        %1036 = vmatprep.subr.bf16.mxu0 %v876
        %1037 = vmatpush1.bf16.msra.mxu0 %v875
        %1038 = vmatprep.subr.bf16.mxu0 %v880
        %1039 = vmatpush1.bf16.msra.mxu0 %v879
        %1040 = vmatprep.subr.bf16.mxu0 %v884
        %1041 = vmatpush1.bf16.msra.mxu0 %v883
        %1042 = vmatprep.subr.bf16.mxu0 0
        %1043 = vmatpush1.bf16.msra.mxu0 0
        %1044 = vmatprep.subr.bf16.mxu0 0
        %1045 = vmatpush1.bf16.msra.mxu0 0
        %1046 = vmatprep.subr.bf16.mxu0 0
        %1047 = vmatpush1.bf16.msra.mxu0 0
        %1048 = vmatprep.subr.bf16.mxu0 0
        %1049 = vmatpush1.bf16.msra.mxu0 0
        %1050 = vmatprep.subr.bf16.mxu0 0
        %1051 = vmatpush1.bf16.msra.mxu0 0
        %1052 = vmatprep.subr.bf16.mxu0 0
        %1053 = vmatpush1.bf16.msra.mxu0 0
        %1054 = vmatprep.subr.bf16.mxu0 0
        %1055 = vmatpush1.bf16.msra.mxu0 0
        %1056 = vmatprep.subr.bf16.mxu0 0
        %1057 = vmatpush1.bf16.msra.mxu0 0
        %1058 = vmatprep.mubr.bf16.mxu0 0
        %1059 = vmatmul.mubr.bf16.gmra.mrb[0].mxu0 %v384
        %v1060 = vpop.f32.mrb[0].mxu0
        %v1061 = vadd.f32 %v1018, %v1060
        %v1062 = vpop.f32.mrb[0].mxu0
        %v1063 = vadd.f32 %v1020, %v1062
        %v1064 = vpop.f32.mrb[0].mxu0
        %v1065 = vadd.f32 %v1022, %v1064
        %v1066 = vpop.f32.mrb[0].mxu0
        %v1067 = vadd.f32 %v1024, %v1066
        %1068 = vdwg.mxu0
        %1069 = vmatprep.subr.bf16.mxu0 %v794
        %1070 = vmatpush1.bf16.msra.mxu0 %v793
        %1071 = vmatprep.subr.bf16.mxu0 %v798
        %1072 = vmatpush1.bf16.msra.mxu0 %v797
        %1073 = vmatprep.subr.bf16.mxu0 %v802
        %1074 = vmatpush1.bf16.msra.mxu0 %v801
        %1075 = vmatprep.subr.bf16.mxu0 %v806
        %1076 = vmatpush1.bf16.msra.mxu0 %v805
        %1077 = vmatprep.subr.bf16.mxu0 %v810
        %1078 = vmatpush1.bf16.msra.mxu0 %v809
        %1079 = vmatprep.subr.bf16.mxu0 %v814
        %1080 = vmatpush1.bf16.msra.mxu0 %v813
        %1081 = vmatprep.subr.bf16.mxu0 %v818
        %1082 = vmatpush1.bf16.msra.mxu0 %v817
        %1083 = vmatprep.subr.bf16.mxu0 %v822
        %1084 = vmatpush1.bf16.msra.mxu0 %v821
        %1085 = vmatprep.subr.bf16.mxu0 %v826
        %1086 = vmatpush1.bf16.msra.mxu0 %v825
        %1087 = vmatprep.subr.bf16.mxu0 %v830
        %1088 = vmatpush1.bf16.msra.mxu0 %v829
        %1089 = vmatprep.subr.bf16.mxu0 %v834
        %1090 = vmatpush1.bf16.msra.mxu0 %v833
        %1091 = vmatprep.subr.bf16.mxu0 %v838
        %1092 = vmatpush1.bf16.msra.mxu0 %v837
        %1093 = vmatprep.subr.bf16.mxu0 %v842
        %1094 = vmatpush1.bf16.msra.mxu0 %v841
        %1095 = vmatprep.subr.bf16.mxu0 %v846
        %1096 = vmatpush1.bf16.msra.mxu0 %v845
        %1097 = vmatprep.subr.bf16.mxu0 %v850
        %1098 = vmatpush1.bf16.msra.mxu0 %v849
        %1099 = vmatprep.subr.bf16.mxu0 %v854
        %1100 = vmatpush1.bf16.msra.mxu0 %v853
        %1101 = vmatprep.mubr.bf16.mxu0 %v383
        %1102 = vmatmul.mubr.bf16.gmra.mrb[0].mxu0 %v382
        %v1103 = vpop.f32.mrb[0].mxu0
        %v1104 = vadd.f32 %v494, %v1103
        %v1105 = vpop.f32.mrb[0].mxu0
        %v1106 = vadd.f32 %v498, %v1105
        %v1107 = vpop.f32.mrb[0].mxu0
        %v1108 = vadd.f32 %v494, %v1107
        %v1109 = vpop.f32.mrb[0].mxu0
        %v1110 = vadd.f32 %v498, %v1109
        %1111 = vdwg.mxu0
        %1112 = vmatprep.subr.bf16.mxu0 %v858
        %1113 = vmatpush1.bf16.msra.mxu0 %v857
        %1114 = vmatprep.subr.bf16.mxu0 %v862
        %1115 = vmatpush1.bf16.msra.mxu0 %v861
        %1116 = vmatprep.subr.bf16.mxu0 %v866
        %1117 = vmatpush1.bf16.msra.mxu0 %v865
        %1118 = vmatprep.subr.bf16.mxu0 %v870
        %1119 = vmatpush1.bf16.msra.mxu0 %v869
        %1120 = vmatprep.subr.bf16.mxu0 %v874
        %1121 = vmatpush1.bf16.msra.mxu0 %v873
        %1122 = vmatprep.subr.bf16.mxu0 %v878
        %1123 = vmatpush1.bf16.msra.mxu0 %v877
        %1124 = vmatprep.subr.bf16.mxu0 %v882
        %1125 = vmatpush1.bf16.msra.mxu0 %v881
        %1126 = vmatprep.subr.bf16.mxu0 %v886
        %1127 = vmatpush1.bf16.msra.mxu0 %v885
        %1128 = vmatprep.subr.bf16.mxu0 0
        %1129 = vmatpush1.bf16.msra.mxu0 0
        %1130 = vmatprep.subr.bf16.mxu0 0
        %1131 = vmatpush1.bf16.msra.mxu0 0
        %1132 = vmatprep.subr.bf16.mxu0 0
        %1133 = vmatpush1.bf16.msra.mxu0 0
        %1134 = vmatprep.subr.bf16.mxu0 0
        %1135 = vmatpush1.bf16.msra.mxu0 0
        %1136 = vmatprep.subr.bf16.mxu0 0
        %1137 = vmatpush1.bf16.msra.mxu0 0
        %1138 = vmatprep.subr.bf16.mxu0 0
        %1139 = vmatpush1.bf16.msra.mxu0 0
        %1140 = vmatprep.subr.bf16.mxu0 0
        %1141 = vmatpush1.bf16.msra.mxu0 0
        %1142 = vmatprep.subr.bf16.mxu0 0
        %1143 = vmatpush1.bf16.msra.mxu0 0
        %1144 = vmatprep.mubr.bf16.mxu0 0
        %1145 = vmatmul.mubr.bf16.gmra.mrb[0].mxu0 %v384
        %v1146 = vpop.f32.mrb[0].mxu0
        %v1147 = vadd.f32 %v1104, %v1146
        %v1148 = vpop.f32.mrb[0].mxu0
        %v1149 = vadd.f32 %v1106, %v1148
        %v1150 = vpop.f32.mrb[0].mxu0
        %v1151 = vadd.f32 %v1108, %v1150
        %v1152 = vpop.f32.mrb[0].mxu0
        %v1153 = vadd.f32 %v1110, %v1152
        %1154 = vdwg.mxu0
        %v1155 = vmax.f32 %v1061, 0.0
        %v1156 = vmax.f32 %v1063, 0.0
        %v1157 = vmax.f32 %v1147, 0.0
        %v1158 = vmax.f32 %v1149, 0.0
        %v1159 = vmax.f32 %v1065, 0.0
        %v1160 = vmax.f32 %v1067, 0.0
        %v1161 = vmax.f32 %v1151, 0.0
        %v1162 = vmax.f32 %v1153, 0.0
        %v1163 = vld [vmem:[#allocation2] sm:$0xff]
        %v1164 = vld [vmem:[#allocation2 + $0x8] sm:$0xff]
        %v1165 = vld [vmem:[#allocation2 + $0x10] sm:$0xff]
        %v1166 = vld [vmem:[#allocation2 + $0x18] sm:$0xff]
        %v1167 = vld [vmem:[#allocation2 + $0x20] sm:$0xff]
        %v1168 = vld [vmem:[#allocation2 + $0x28] sm:$0xff]
        %v1169 = vpack.c.bf16 %v1159, %v1155
        %v1170 = vpack.c.bf16 %v1160, %v1156
        %v1171 = vpack.c.bf16 %v1161, %v1157
        %v1172 = vpack.c.bf16 %v1162, %v1158
        %v1173 = vld [vmem:[%s324] sm:$0xff]
        %v1174 = vld [vmem:[%s324 + $0x8] sm:$0xf]
        %v1175 = vld [vmem:[%s324 + $0xc] sm:$0xff]
        %v1176 = vld [vmem:[%s324 + $0x14] sm:$0xf]
        %v1177 = vld [vmem:[%s324 + $0x18] sm:$0xff]
        %v1178 = vld [vmem:[%s324 + $0x20] sm:$0xf]
        %v1179 = vld [vmem:[%s324 + $0x24] sm:$0xff]
        %v1180 = vld [vmem:[%s324 + $0x2c] sm:$0xf]
        %v1181 = vld [vmem:[%s324 + $0x30] sm:$0xff]
        %v1182 = vld [vmem:[%s324 + $0x38] sm:$0xf]
        %v1183 = vld [vmem:[%s324 + $0x3c] sm:$0xff]
        %v1184 = vld [vmem:[%s324 + $0x44] sm:$0xf]
        %v1185 = vld [vmem:[%s324 + $0x48] sm:$0xff]
        %v1186 = vld [vmem:[%s324 + $0x50] sm:$0xf]
        %v1187 = vld [vmem:[%s324 + $0x54] sm:$0xff]
        %v1188 = vld [vmem:[%s324 + $0x5c] sm:$0xf]
        %v1189 = vld [vmem:[%s324 + $0x60] sm:$0xff]
        %v1190 = vld [vmem:[%s324 + $0x68] sm:$0xf]
        %v1191 = vld [vmem:[%s324 + $0x6c] sm:$0xff]
        %v1192 = vld [vmem:[%s324 + $0x74] sm:$0xf]
        %v1193 = vld [vmem:[%s324 + $0x78] sm:$0xff]
        %v1194 = vld [vmem:[%s324 + $0x80] sm:$0xf]
        %v1195 = vld [vmem:[%s324 + $0x84] sm:$0xff]
        %v1196 = vld [vmem:[%s324 + $0x8c] sm:$0xf]
        %v1197 = vld [vmem:[%s324 + $0x90] sm:$0xff]
        %v1198 = vld [vmem:[%s324 + $0x98] sm:$0xf]
        %v1199 = vld [vmem:[%s324 + $0x9c] sm:$0xff]
        %v1200 = vld [vmem:[%s324 + $0xa4] sm:$0xf]
        %v1201 = vld [vmem:[%s324 + $0xa8] sm:$0xff]
        %v1202 = vld [vmem:[%s324 + $0xb0] sm:$0xf]
        %v1203 = vld [vmem:[%s324 + $0xb4] sm:$0xff]
        %v1204 = vld [vmem:[%s324 + $0xbc] sm:$0xf]
        %v1205 = vld [vmem:[%s324 + $0xc0] sm:$0xff]
        %v1206 = vld [vmem:[%s324 + $0xc8] sm:$0xf]
        %v1207 = vld [vmem:[%s324 + $0xcc] sm:$0xff]
        %v1208 = vld [vmem:[%s324 + $0xd4] sm:$0xf]
        %v1209 = vld [vmem:[%s324 + $0xd8] sm:$0xff]
        %v1210 = vld [vmem:[%s324 + $0xe0] sm:$0xf]
        %v1211 = vld [vmem:[%s324 + $0xe4] sm:$0xff]
        %v1212 = vld [vmem:[%s324 + $0xec] sm:$0xf]
        %v1213 = vld [vmem:[%s324 + $0xf0] sm:$0xff]
        %v1214 = vld [vmem:[%s324 + $0xf8] sm:$0xf]
        %v1215 = vld [vmem:[%s324 + $0xfc] sm:$0xff]
        %v1216 = vld [vmem:[%s324 + $0x104] sm:$0xf]
        %v1217 = vld [vmem:[%s324 + $0x108] sm:$0xff]
        %v1218 = vld [vmem:[%s324 + $0x110] sm:$0xf]
        %v1219 = vld [vmem:[%s324 + $0x114] sm:$0xff]
        %v1220 = vld [vmem:[%s324 + $0x11c] sm:$0xf]
        %v1221 = vld [vmem:[%s324 + $0x120] sm:$0xff]
        %v1222 = vld [vmem:[%s324 + $0x128] sm:$0xf]
        %v1223 = vld [vmem:[%s324 + $0x12c] sm:$0xff]
        %v1224 = vld [vmem:[%s324 + $0x134] sm:$0xf]
        %v1225 = vld [vmem:[%s324 + $0x138] sm:$0xff]
        %v1226 = vld [vmem:[%s324 + $0x140] sm:$0xf]
        %v1227 = vld [vmem:[%s324 + $0x144] sm:$0xff]
        %v1228 = vld [vmem:[%s324 + $0x14c] sm:$0xf]
        %v1229 = vld [vmem:[%s324 + $0x150] sm:$0xff]
        %v1230 = vld [vmem:[%s324 + $0x158] sm:$0xf]
        %v1231 = vld [vmem:[%s324 + $0x15c] sm:$0xff]
        %v1232 = vld [vmem:[%s324 + $0x164] sm:$0xf]
        %v1233 = vld [vmem:[%s324 + $0x168] sm:$0xff]
        %v1234 = vld [vmem:[%s324 + $0x170] sm:$0xf]
        %v1235 = vld [vmem:[%s324 + $0x174] sm:$0xff]
        %v1236 = vld [vmem:[%s324 + $0x17c] sm:$0xf]
        %v1237 = vld [vmem:[%s324 + $0x180] sm:$0xff]
        %v1238 = vld [vmem:[%s324 + $0x188] sm:$0xf]
        %v1239 = vld [vmem:[%s324 + $0x18c] sm:$0xff]
        %v1240 = vld [vmem:[%s324 + $0x194] sm:$0xf]
        %v1241 = vld [vmem:[%s324 + $0x198] sm:$0xff]
        %v1242 = vld [vmem:[%s324 + $0x1a0] sm:$0xf]
        %v1243 = vld [vmem:[%s324 + $0x1a4] sm:$0xff]
        %v1244 = vld [vmem:[%s324 + $0x1ac] sm:$0xf]
        %v1245 = vld [vmem:[%s324 + $0x1b0] sm:$0xff]
        %v1246 = vld [vmem:[%s324 + $0x1b8] sm:$0xf]
        %v1247 = vld [vmem:[%s324 + $0x1bc] sm:$0xff]
        %v1248 = vld [vmem:[%s324 + $0x1c4] sm:$0xf]
        %v1249 = vld [vmem:[%s324 + $0x1c8] sm:$0xff]
        %v1250 = vld [vmem:[%s324 + $0x1d0] sm:$0xf]
        %v1251 = vld [vmem:[%s324 + $0x1d4] sm:$0xff]
        %v1252 = vld [vmem:[%s324 + $0x1dc] sm:$0xf]
        %v1253 = vld [vmem:[%s324 + $0x1e0] sm:$0xff]
        %v1254 = vld [vmem:[%s324 + $0x1e8] sm:$0xf]
        %v1255 = vld [vmem:[%s324 + $0x1ec] sm:$0xff]
        %v1256 = vld [vmem:[%s324 + $0x1f4] sm:$0xf]
        %v1257 = vld [vmem:[%s324 + $0x1f8] sm:$0xff]
        %v1258 = vld [vmem:[%s324 + $0x200] sm:$0xf]
        %v1259 = vld [vmem:[%s324 + $0x204] sm:$0xff]
        %v1260 = vld [vmem:[%s324 + $0x20c] sm:$0xf]
        %v1261 = vld [vmem:[%s324 + $0x210] sm:$0xff]
        %v1262 = vld [vmem:[%s324 + $0x218] sm:$0xf]
        %v1263 = vld [vmem:[%s324 + $0x21c] sm:$0xff]
        %v1264 = vld [vmem:[%s324 + $0x224] sm:$0xf]
        %v1265 = vld [vmem:[%s324 + $0x228] sm:$0xff]
        %v1266 = vld [vmem:[%s324 + $0x230] sm:$0xf]
        %v1267 = vld [vmem:[%s324 + $0x234] sm:$0xff]
        %v1268 = vld [vmem:[%s324 + $0x23c] sm:$0xf]
        %v1269 = vld [vmem:[%s324 + $0x240] sm:$0xff]
        %v1270 = vld [vmem:[%s324 + $0x248] sm:$0xf]
        %v1271 = vld [vmem:[%s324 + $0x24c] sm:$0xff]
        %v1272 = vld [vmem:[%s324 + $0x254] sm:$0xf]
        %v1273 = vld [vmem:[%s324 + $0x258] sm:$0xff]
        %v1274 = vld [vmem:[%s324 + $0x260] sm:$0xf]
        %v1275 = vld [vmem:[%s324 + $0x264] sm:$0xff]
        %v1276 = vld [vmem:[%s324 + $0x26c] sm:$0xf]
        %v1277 = vld [vmem:[%s324 + $0x270] sm:$0xff]
        %v1278 = vld [vmem:[%s324 + $0x278] sm:$0xf]
        %v1279 = vld [vmem:[%s324 + $0x27c] sm:$0xff]
        %v1280 = vld [vmem:[%s324 + $0x284] sm:$0xf]
        %v1281 = vld [vmem:[%s324 + $0x288] sm:$0xff]
        %v1282 = vld [vmem:[%s324 + $0x290] sm:$0xf]
        %v1283 = vld [vmem:[%s324 + $0x294] sm:$0xff]
        %v1284 = vld [vmem:[%s324 + $0x29c] sm:$0xf]
        %v1285 = vld [vmem:[%s324 + $0x2a0] sm:$0xff]
        %v1286 = vld [vmem:[%s324 + $0x2a8] sm:$0xf]
        %v1287 = vld [vmem:[%s324 + $0x2ac] sm:$0xff]
        %v1288 = vld [vmem:[%s324 + $0x2b4] sm:$0xf]
        %v1289 = vld [vmem:[%s324 + $0x2b8] sm:$0xff]
        %v1290 = vld [vmem:[%s324 + $0x2c0] sm:$0xf]
        %v1291 = vld [vmem:[%s324 + $0x2c4] sm:$0xff]
        %v1292 = vld [vmem:[%s324 + $0x2cc] sm:$0xf]
        %v1293 = vld [vmem:[%s324 + $0x2d0] sm:$0xff]
        %v1294 = vld [vmem:[%s324 + $0x2d8] sm:$0xf]
        %v1295 = vld [vmem:[%s324 + $0x2dc] sm:$0xff]
        %v1296 = vld [vmem:[%s324 + $0x2e4] sm:$0xf]
        %v1297 = vld [vmem:[%s324 + $0x2e8] sm:$0xff]
        %v1298 = vld [vmem:[%s324 + $0x2f0] sm:$0xf]
        %v1299 = vld [vmem:[%s324 + $0x2f4] sm:$0xff]
        %v1300 = vld [vmem:[%s324 + $0x2fc] sm:$0xf]
        %v1429 = vunpack.c.l.b16 %v1173
        %v1430 = vunpack.c.h.b16 %v1173
        %v1431 = vunpack.c.l.b16 %v1174
        %v1432 = vunpack.c.l.b16 %v1175
        %v1433 = vunpack.c.h.b16 %v1175
        %v1434 = vunpack.c.l.b16 %v1176
        %v1435 = vunpack.c.l.b16 %v1177
        %v1436 = vunpack.c.h.b16 %v1177
        %v1437 = vunpack.c.l.b16 %v1178
        %v1438 = vunpack.c.l.b16 %v1179
        %v1439 = vunpack.c.h.b16 %v1179
        %v1440 = vunpack.c.l.b16 %v1180
        %v1441 = vunpack.c.l.b16 %v1181
        %v1442 = vunpack.c.h.b16 %v1181
        %v1443 = vunpack.c.l.b16 %v1182
        %v1444 = vunpack.c.l.b16 %v1183
        %v1445 = vunpack.c.h.b16 %v1183
        %v1446 = vunpack.c.l.b16 %v1184
        %v1447 = vunpack.c.l.b16 %v1185
        %v1448 = vunpack.c.h.b16 %v1185
        %v1449 = vunpack.c.l.b16 %v1186
        %v1450 = vunpack.c.l.b16 %v1187
        %v1451 = vunpack.c.h.b16 %v1187
        %v1452 = vunpack.c.l.b16 %v1188
        %v1453 = vunpack.c.l.b16 %v1189
        %v1454 = vunpack.c.h.b16 %v1189
        %v1455 = vunpack.c.l.b16 %v1190
        %v1456 = vunpack.c.l.b16 %v1191
        %v1457 = vunpack.c.h.b16 %v1191
        %v1458 = vunpack.c.l.b16 %v1192
        %v1459 = vunpack.c.l.b16 %v1193
        %v1460 = vunpack.c.h.b16 %v1193
        %v1461 = vunpack.c.l.b16 %v1194
        %v1462 = vunpack.c.l.b16 %v1195
        %v1463 = vunpack.c.h.b16 %v1195
        %v1464 = vunpack.c.l.b16 %v1196
        %v1465 = vunpack.c.l.b16 %v1197
        %v1466 = vunpack.c.h.b16 %v1197
        %v1467 = vunpack.c.l.b16 %v1198
        %v1468 = vunpack.c.l.b16 %v1199
        %v1469 = vunpack.c.h.b16 %v1199
        %v1470 = vunpack.c.l.b16 %v1200
        %v1471 = vunpack.c.l.b16 %v1201
        %v1472 = vunpack.c.h.b16 %v1201
        %v1473 = vunpack.c.l.b16 %v1202
        %v1474 = vunpack.c.l.b16 %v1203
        %v1475 = vunpack.c.h.b16 %v1203
        %v1476 = vunpack.c.l.b16 %v1204
        %v1477 = vunpack.c.l.b16 %v1205
        %v1478 = vunpack.c.h.b16 %v1205
        %v1479 = vunpack.c.l.b16 %v1206
        %v1480 = vunpack.c.l.b16 %v1207
        %v1481 = vunpack.c.h.b16 %v1207
        %v1482 = vunpack.c.l.b16 %v1208
        %v1483 = vunpack.c.l.b16 %v1209
        %v1484 = vunpack.c.h.b16 %v1209
        %v1485 = vunpack.c.l.b16 %v1210
        %v1486 = vunpack.c.l.b16 %v1211
        %v1487 = vunpack.c.h.b16 %v1211
        %v1488 = vunpack.c.l.b16 %v1212
        %v1489 = vunpack.c.l.b16 %v1213
        %v1490 = vunpack.c.h.b16 %v1213
        %v1491 = vunpack.c.l.b16 %v1214
        %v1492 = vunpack.c.l.b16 %v1215
        %v1493 = vunpack.c.h.b16 %v1215
        %v1494 = vunpack.c.l.b16 %v1216
        %v1495 = vunpack.c.l.b16 %v1217
        %v1496 = vunpack.c.h.b16 %v1217
        %v1497 = vunpack.c.l.b16 %v1218
        %v1498 = vunpack.c.l.b16 %v1219
        %v1499 = vunpack.c.h.b16 %v1219
        %v1500 = vunpack.c.l.b16 %v1220
        %v1501 = vunpack.c.l.b16 %v1221
        %v1502 = vunpack.c.h.b16 %v1221
        %v1503 = vunpack.c.l.b16 %v1222
        %v1504 = vunpack.c.l.b16 %v1223
        %v1505 = vunpack.c.h.b16 %v1223
        %v1506 = vunpack.c.l.b16 %v1224
        %v1507 = vunpack.c.l.b16 %v1225
        %v1508 = vunpack.c.h.b16 %v1225
        %v1509 = vunpack.c.l.b16 %v1226
        %v1510 = vunpack.c.l.b16 %v1227
        %v1511 = vunpack.c.h.b16 %v1227
        %v1512 = vunpack.c.l.b16 %v1228
        %v1513 = vunpack.c.l.b16 %v1229
        %v1514 = vunpack.c.h.b16 %v1229
        %v1515 = vunpack.c.l.b16 %v1230
        %v1516 = vunpack.c.l.b16 %v1231
        %v1517 = vunpack.c.h.b16 %v1231
        %v1518 = vunpack.c.l.b16 %v1232
        %v1519 = vunpack.c.l.b16 %v1233
        %v1520 = vunpack.c.h.b16 %v1233
        %v1521 = vunpack.c.l.b16 %v1234
        %v1522 = vunpack.c.l.b16 %v1235
        %v1523 = vunpack.c.h.b16 %v1235
        %v1524 = vunpack.c.l.b16 %v1236
        %v1525 = vunpack.c.l.b16 %v1237
        %v1526 = vunpack.c.h.b16 %v1237
        %v1527 = vunpack.c.l.b16 %v1238
        %v1528 = vunpack.c.l.b16 %v1239
        %v1529 = vunpack.c.h.b16 %v1239
        %v1530 = vunpack.c.l.b16 %v1240
        %v1531 = vunpack.c.l.b16 %v1241
        %v1532 = vunpack.c.h.b16 %v1241
        %v1533 = vunpack.c.l.b16 %v1242
        %v1534 = vunpack.c.l.b16 %v1243
        %v1535 = vunpack.c.h.b16 %v1243
        %v1536 = vunpack.c.l.b16 %v1244
        %v1537 = vunpack.c.l.b16 %v1245
        %v1538 = vunpack.c.h.b16 %v1245
        %v1539 = vunpack.c.l.b16 %v1246
        %v1540 = vunpack.c.l.b16 %v1247
        %v1541 = vunpack.c.h.b16 %v1247
        %v1542 = vunpack.c.l.b16 %v1248
        %v1543 = vunpack.c.l.b16 %v1249
        %v1544 = vunpack.c.h.b16 %v1249
        %v1545 = vunpack.c.l.b16 %v1250
        %v1546 = vunpack.c.l.b16 %v1251
        %v1547 = vunpack.c.h.b16 %v1251
        %v1548 = vunpack.c.l.b16 %v1252
        %v1549 = vunpack.c.l.b16 %v1253
        %v1550 = vunpack.c.h.b16 %v1253
        %v1551 = vunpack.c.l.b16 %v1254
        %v1552 = vunpack.c.l.b16 %v1255
        %v1553 = vunpack.c.h.b16 %v1255
        %v1554 = vunpack.c.l.b16 %v1256
        %v1555 = vunpack.c.l.b16 %v1257
        %v1556 = vunpack.c.h.b16 %v1257
        %v1557 = vunpack.c.l.b16 %v1258
        %v1558 = vunpack.c.l.b16 %v1259
        %v1559 = vunpack.c.h.b16 %v1259
        %v1560 = vunpack.c.l.b16 %v1260
        %v1561 = vunpack.c.l.b16 %v1261
        %v1562 = vunpack.c.h.b16 %v1261
        %v1563 = vunpack.c.l.b16 %v1262
        %v1564 = vunpack.c.l.b16 %v1263
        %v1565 = vunpack.c.h.b16 %v1263
        %v1566 = vunpack.c.l.b16 %v1264
        %v1567 = vunpack.c.l.b16 %v1265
        %v1568 = vunpack.c.h.b16 %v1265
        %v1569 = vunpack.c.l.b16 %v1266
        %v1570 = vunpack.c.l.b16 %v1267
        %v1571 = vunpack.c.h.b16 %v1267
        %v1572 = vunpack.c.l.b16 %v1268
        %v1573 = vunpack.c.l.b16 %v1269
        %v1574 = vunpack.c.h.b16 %v1269
        %v1575 = vunpack.c.l.b16 %v1270
        %v1576 = vunpack.c.l.b16 %v1271
        %v1577 = vunpack.c.h.b16 %v1271
        %v1578 = vunpack.c.l.b16 %v1272
        %v1579 = vunpack.c.l.b16 %v1273
        %v1580 = vunpack.c.h.b16 %v1273
        %v1581 = vunpack.c.l.b16 %v1274
        %v1582 = vunpack.c.l.b16 %v1275
        %v1583 = vunpack.c.h.b16 %v1275
        %v1584 = vunpack.c.l.b16 %v1276
        %v1585 = vunpack.c.l.b16 %v1277
        %v1586 = vunpack.c.h.b16 %v1277
        %v1587 = vunpack.c.l.b16 %v1278
        %v1588 = vunpack.c.l.b16 %v1279
        %v1589 = vunpack.c.h.b16 %v1279
        %v1590 = vunpack.c.l.b16 %v1280
        %v1591 = vunpack.c.l.b16 %v1281
        %v1592 = vunpack.c.h.b16 %v1281
        %v1593 = vunpack.c.l.b16 %v1282
        %v1594 = vunpack.c.l.b16 %v1283
        %v1595 = vunpack.c.h.b16 %v1283
        %v1596 = vunpack.c.l.b16 %v1284
        %v1597 = vunpack.c.l.b16 %v1285
        %v1598 = vunpack.c.h.b16 %v1285
        %v1599 = vunpack.c.l.b16 %v1286
        %v1600 = vunpack.c.l.b16 %v1287
        %v1601 = vunpack.c.h.b16 %v1287
        %v1602 = vunpack.c.l.b16 %v1288
        %v1603 = vunpack.c.l.b16 %v1289
        %v1604 = vunpack.c.h.b16 %v1289
        %v1605 = vunpack.c.l.b16 %v1290
        %v1606 = vunpack.c.l.b16 %v1291
        %v1607 = vunpack.c.h.b16 %v1291
        %v1608 = vunpack.c.l.b16 %v1292
        %v1609 = vunpack.c.l.b16 %v1293
        %v1610 = vunpack.c.h.b16 %v1293
        %v1611 = vunpack.c.l.b16 %v1294
        %v1612 = vunpack.c.l.b16 %v1295
        %v1613 = vunpack.c.h.b16 %v1295
        %v1614 = vunpack.c.l.b16 %v1296
        %v1615 = vunpack.c.l.b16 %v1297
        %v1616 = vunpack.c.h.b16 %v1297
        %v1617 = vunpack.c.l.b16 %v1298
        %v1618 = vunpack.c.l.b16 %v1299
        %v1619 = vunpack.c.h.b16 %v1299
        %v1620 = vunpack.c.l.b16 %v1300
        %v1621 = vpack.c.b16 %v1432, %v1429
        %v1622 = vpack.c.b16 %v1433, %v1430
        %v1623 = vpack.c.b16 %v1434, %v1431
        %v1624 = vpack.c.b16 %v1438, %v1435
        %v1625 = vpack.c.b16 %v1439, %v1436
        %v1626 = vpack.c.b16 %v1440, %v1437
        %v1627 = vpack.c.b16 %v1444, %v1441
        %v1628 = vpack.c.b16 %v1445, %v1442
        %v1629 = vpack.c.b16 %v1446, %v1443
        %v1630 = vpack.c.b16 %v1450, %v1447
        %v1631 = vpack.c.b16 %v1451, %v1448
        %v1632 = vpack.c.b16 %v1452, %v1449
        %v1633 = vpack.c.b16 %v1456, %v1453
        %v1634 = vpack.c.b16 %v1457, %v1454
        %v1635 = vpack.c.b16 %v1458, %v1455
        %v1636 = vpack.c.b16 %v1462, %v1459
        %v1637 = vpack.c.b16 %v1463, %v1460
        %v1638 = vpack.c.b16 %v1464, %v1461
        %v1639 = vpack.c.b16 %v1468, %v1465
        %v1640 = vpack.c.b16 %v1469, %v1466
        %v1641 = vpack.c.b16 %v1470, %v1467
        %v1642 = vpack.c.b16 %v1474, %v1471
        %v1643 = vpack.c.b16 %v1475, %v1472
        %v1644 = vpack.c.b16 %v1476, %v1473
        %v1645 = vpack.c.b16 %v1480, %v1477
        %v1646 = vpack.c.b16 %v1481, %v1478
        %v1647 = vpack.c.b16 %v1482, %v1479
        %v1648 = vpack.c.b16 %v1486, %v1483
        %v1649 = vpack.c.b16 %v1487, %v1484
        %v1650 = vpack.c.b16 %v1488, %v1485
        %v1651 = vpack.c.b16 %v1492, %v1489
        %v1652 = vpack.c.b16 %v1493, %v1490
        %v1653 = vpack.c.b16 %v1494, %v1491
        %v1654 = vpack.c.b16 %v1498, %v1495
        %v1655 = vpack.c.b16 %v1499, %v1496
        %v1656 = vpack.c.b16 %v1500, %v1497
        %v1657 = vpack.c.b16 %v1504, %v1501
        %v1658 = vpack.c.b16 %v1505, %v1502
        %v1659 = vpack.c.b16 %v1506, %v1503
        %v1660 = vpack.c.b16 %v1510, %v1507
        %v1661 = vpack.c.b16 %v1511, %v1508
        %v1662 = vpack.c.b16 %v1512, %v1509
        %v1663 = vpack.c.b16 %v1516, %v1513
        %v1664 = vpack.c.b16 %v1517, %v1514
        %v1665 = vpack.c.b16 %v1518, %v1515
        %v1666 = vpack.c.b16 %v1522, %v1519
        %v1667 = vpack.c.b16 %v1523, %v1520
        %v1668 = vpack.c.b16 %v1524, %v1521
        %v1669 = vpack.c.b16 %v1528, %v1525
        %v1670 = vpack.c.b16 %v1529, %v1526
        %v1671 = vpack.c.b16 %v1530, %v1527
        %v1672 = vpack.c.b16 %v1534, %v1531
        %v1673 = vpack.c.b16 %v1535, %v1532
        %v1674 = vpack.c.b16 %v1536, %v1533
        %v1675 = vpack.c.b16 %v1540, %v1537
        %v1676 = vpack.c.b16 %v1541, %v1538
        %v1677 = vpack.c.b16 %v1542, %v1539
        %v1678 = vpack.c.b16 %v1546, %v1543
        %v1679 = vpack.c.b16 %v1547, %v1544
        %v1680 = vpack.c.b16 %v1548, %v1545
        %v1681 = vpack.c.b16 %v1552, %v1549
        %v1682 = vpack.c.b16 %v1553, %v1550
        %v1683 = vpack.c.b16 %v1554, %v1551
        %v1684 = vpack.c.b16 %v1558, %v1555
        %v1685 = vpack.c.b16 %v1559, %v1556
        %v1686 = vpack.c.b16 %v1560, %v1557
        %v1687 = vpack.c.b16 %v1564, %v1561
        %v1688 = vpack.c.b16 %v1565, %v1562
        %v1689 = vpack.c.b16 %v1566, %v1563
        %v1690 = vpack.c.b16 %v1570, %v1567
        %v1691 = vpack.c.b16 %v1571, %v1568
        %v1692 = vpack.c.b16 %v1572, %v1569
        %v1693 = vpack.c.b16 %v1576, %v1573
        %v1694 = vpack.c.b16 %v1577, %v1574
        %v1695 = vpack.c.b16 %v1578, %v1575
        %v1696 = vpack.c.b16 %v1582, %v1579
        %v1697 = vpack.c.b16 %v1583, %v1580
        %v1698 = vpack.c.b16 %v1584, %v1581
        %v1699 = vpack.c.b16 %v1588, %v1585
        %v1700 = vpack.c.b16 %v1589, %v1586
        %v1701 = vpack.c.b16 %v1590, %v1587
        %v1702 = vpack.c.b16 %v1594, %v1591
        %v1703 = vpack.c.b16 %v1595, %v1592
        %v1704 = vpack.c.b16 %v1596, %v1593
        %v1705 = vpack.c.b16 %v1600, %v1597
        %v1706 = vpack.c.b16 %v1601, %v1598
        %v1707 = vpack.c.b16 %v1602, %v1599
        %v1708 = vpack.c.b16 %v1606, %v1603
        %v1709 = vpack.c.b16 %v1607, %v1604
        %v1710 = vpack.c.b16 %v1608, %v1605
        %v1711 = vpack.c.b16 %v1612, %v1609
        %v1712 = vpack.c.b16 %v1613, %v1610
        %v1713 = vpack.c.b16 %v1614, %v1611
        %v1714 = vpack.c.b16 %v1618, %v1615
        %v1715 = vpack.c.b16 %v1619, %v1616
        %v1716 = vpack.c.b16 %v1620, %v1617
        %1813 = vmatprep.subr.bf16.mxu0 %v1622
        %1814 = vmatpush1.bf16.msra.mxu0 %v1621
        %1815 = vmatprep.subr.bf16.mxu0 %v1625
        %1816 = vmatpush1.bf16.msra.mxu0 %v1624
        %1817 = vmatprep.subr.bf16.mxu0 %v1628
        %1818 = vmatpush1.bf16.msra.mxu0 %v1627
        %1819 = vmatprep.subr.bf16.mxu0 %v1631
        %1820 = vmatpush1.bf16.msra.mxu0 %v1630
        %1821 = vmatprep.subr.bf16.mxu0 %v1634
        %1822 = vmatpush1.bf16.msra.mxu0 %v1633
        %1823 = vmatprep.subr.bf16.mxu0 %v1637
        %1824 = vmatpush1.bf16.msra.mxu0 %v1636
        %1825 = vmatprep.subr.bf16.mxu0 %v1640
        %1826 = vmatpush1.bf16.msra.mxu0 %v1639
        %1827 = vmatprep.subr.bf16.mxu0 %v1643
        %1828 = vmatpush1.bf16.msra.mxu0 %v1642
        %1829 = vmatprep.subr.bf16.mxu0 %v1646
        %1830 = vmatpush1.bf16.msra.mxu0 %v1645
        %1831 = vmatprep.subr.bf16.mxu0 %v1649
        %1832 = vmatpush1.bf16.msra.mxu0 %v1648
        %1833 = vmatprep.subr.bf16.mxu0 %v1652
        %1834 = vmatpush1.bf16.msra.mxu0 %v1651
        %1835 = vmatprep.subr.bf16.mxu0 %v1655
        %1836 = vmatpush1.bf16.msra.mxu0 %v1654
        %1837 = vmatprep.subr.bf16.mxu0 %v1658
        %1838 = vmatpush1.bf16.msra.mxu0 %v1657
        %1839 = vmatprep.subr.bf16.mxu0 %v1661
        %1840 = vmatpush1.bf16.msra.mxu0 %v1660
        %1841 = vmatprep.subr.bf16.mxu0 %v1664
        %1842 = vmatpush1.bf16.msra.mxu0 %v1663
        %1843 = vmatprep.subr.bf16.mxu0 %v1667
        %1844 = vmatpush1.bf16.msra.mxu0 %v1666
        %1845 = vmatprep.mubr.bf16.mxu0 %v1170
        %1846 = vmatmul.mubr.bf16.gmra.mrb[0].mxu0 %v1169
        %v1847 = vpop.f32.mrb[0].mxu0
        %v1848 = vadd.f32 0.0, %v1847
        %v1849 = vpop.f32.mrb[0].mxu0
        %v1850 = vadd.f32 0.0, %v1849
        %v1851 = vpop.f32.mrb[0].mxu0
        %v1852 = vadd.f32 0.0, %v1851
        %v1853 = vpop.f32.mrb[0].mxu0
        %v1854 = vadd.f32 0.0, %v1853
        %1855 = vdwg.mxu0
        %1856 = vmatprep.subr.bf16.mxu0 %v1670
        %1857 = vmatpush1.bf16.msra.mxu0 %v1669
        %1858 = vmatprep.subr.bf16.mxu0 %v1673
        %1859 = vmatpush1.bf16.msra.mxu0 %v1672
        %1860 = vmatprep.subr.bf16.mxu0 %v1676
        %1861 = vmatpush1.bf16.msra.mxu0 %v1675
        %1862 = vmatprep.subr.bf16.mxu0 %v1679
        %1863 = vmatpush1.bf16.msra.mxu0 %v1678
        %1864 = vmatprep.subr.bf16.mxu0 %v1682
        %1865 = vmatpush1.bf16.msra.mxu0 %v1681
        %1866 = vmatprep.subr.bf16.mxu0 %v1685
        %1867 = vmatpush1.bf16.msra.mxu0 %v1684
        %1868 = vmatprep.subr.bf16.mxu0 %v1688
        %1869 = vmatpush1.bf16.msra.mxu0 %v1687
        %1870 = vmatprep.subr.bf16.mxu0 %v1691
        %1871 = vmatpush1.bf16.msra.mxu0 %v1690
        %1872 = vmatprep.subr.bf16.mxu0 %v1694
        %1873 = vmatpush1.bf16.msra.mxu0 %v1693
        %1874 = vmatprep.subr.bf16.mxu0 %v1697
        %1875 = vmatpush1.bf16.msra.mxu0 %v1696
        %1876 = vmatprep.subr.bf16.mxu0 %v1700
        %1877 = vmatpush1.bf16.msra.mxu0 %v1699
        %1878 = vmatprep.subr.bf16.mxu0 %v1703
        %1879 = vmatpush1.bf16.msra.mxu0 %v1702
        %1880 = vmatprep.subr.bf16.mxu0 %v1706
        %1881 = vmatpush1.bf16.msra.mxu0 %v1705
        %1882 = vmatprep.subr.bf16.mxu0 %v1709
        %1883 = vmatpush1.bf16.msra.mxu0 %v1708
        %1884 = vmatprep.subr.bf16.mxu0 %v1712
        %1885 = vmatpush1.bf16.msra.mxu0 %v1711
        %1886 = vmatprep.subr.bf16.mxu0 %v1715
        %1887 = vmatpush1.bf16.msra.mxu0 %v1714
        %1888 = vmatprep.mubr.bf16.mxu0 %v1172
        %1889 = vmatmul.mubr.bf16.gmra.mrb[0].mxu0 %v1171
        %v1890 = vpop.f32.mrb[0].mxu0
        %v1891 = vadd.f32 %v1848, %v1890
        %v1892 = vpop.f32.mrb[0].mxu0
        %v1893 = vadd.f32 %v1850, %v1892
        %v1894 = vpop.f32.mrb[0].mxu0
        %v1895 = vadd.f32 %v1852, %v1894
        %v1896 = vpop.f32.mrb[0].mxu0
        %v1897 = vadd.f32 %v1854, %v1896
        %1898 = vdwg.mxu0
        %1899 = vmatprep.subr.bf16.mxu0 0
        %1900 = vmatpush1.bf16.msra.mxu0 %v1623
        %1901 = vmatprep.subr.bf16.mxu0 0
        %1902 = vmatpush1.bf16.msra.mxu0 %v1626
        %1903 = vmatprep.subr.bf16.mxu0 0
        %1904 = vmatpush1.bf16.msra.mxu0 %v1629
        %1905 = vmatprep.subr.bf16.mxu0 0
        %1906 = vmatpush1.bf16.msra.mxu0 %v1632
        %1907 = vmatprep.subr.bf16.mxu0 0
        %1908 = vmatpush1.bf16.msra.mxu0 %v1635
        %1909 = vmatprep.subr.bf16.mxu0 0
        %1910 = vmatpush1.bf16.msra.mxu0 %v1638
        %1911 = vmatprep.subr.bf16.mxu0 0
        %1912 = vmatpush1.bf16.msra.mxu0 %v1641
        %1913 = vmatprep.subr.bf16.mxu0 0
        %1914 = vmatpush1.bf16.msra.mxu0 %v1644
        %1915 = vmatprep.subr.bf16.mxu0 0
        %1916 = vmatpush1.bf16.msra.mxu0 %v1647
        %1917 = vmatprep.subr.bf16.mxu0 0
        %1918 = vmatpush1.bf16.msra.mxu0 %v1650
        %1919 = vmatprep.subr.bf16.mxu0 0
        %1920 = vmatpush1.bf16.msra.mxu0 %v1653
        %1921 = vmatprep.subr.bf16.mxu0 0
        %1922 = vmatpush1.bf16.msra.mxu0 %v1656
        %1923 = vmatprep.subr.bf16.mxu0 0
        %1924 = vmatpush1.bf16.msra.mxu0 %v1659
        %1925 = vmatprep.subr.bf16.mxu0 0
        %1926 = vmatpush1.bf16.msra.mxu0 %v1662
        %1927 = vmatprep.subr.bf16.mxu0 0
        %1928 = vmatpush1.bf16.msra.mxu0 %v1665
        %1929 = vmatprep.subr.bf16.mxu0 0
        %1930 = vmatpush1.bf16.msra.mxu0 %v1668
        %1931 = vmatprep.mubr.bf16.mxu0 %v1170
        %1932 = vmatmul.mubr.bf16.gmra.mrb[0].mxu0 %v1169
        %v1933 = vpop.f32.mrb[0].mxu0
        %v1934 = vadd.f32 0.0, %v1933
        %v1935 = vpop.f32.mrb[0].mxu0
        %v1936 = vpop.f32.mrb[0].mxu0
        %v1937 = vadd.f32 0.0, %v1936
        %v1938 = vpop.f32.mrb[0].mxu0
        %1939 = vdwg.mxu0
        %1940 = vmatprep.subr.bf16.mxu0 0
        %1941 = vmatpush1.bf16.msra.mxu0 %v1671
        %1942 = vmatprep.subr.bf16.mxu0 0
        %1943 = vmatpush1.bf16.msra.mxu0 %v1674
        %1944 = vmatprep.subr.bf16.mxu0 0
        %1945 = vmatpush1.bf16.msra.mxu0 %v1677
        %1946 = vmatprep.subr.bf16.mxu0 0
        %1947 = vmatpush1.bf16.msra.mxu0 %v1680
        %1948 = vmatprep.subr.bf16.mxu0 0
        %1949 = vmatpush1.bf16.msra.mxu0 %v1683
        %1950 = vmatprep.subr.bf16.mxu0 0
        %1951 = vmatpush1.bf16.msra.mxu0 %v1686
        %1952 = vmatprep.subr.bf16.mxu0 0
        %1953 = vmatpush1.bf16.msra.mxu0 %v1689
        %1954 = vmatprep.subr.bf16.mxu0 0
        %1955 = vmatpush1.bf16.msra.mxu0 %v1692
        %1956 = vmatprep.subr.bf16.mxu0 0
        %1957 = vmatpush1.bf16.msra.mxu0 %v1695
        %1958 = vmatprep.subr.bf16.mxu0 0
        %1959 = vmatpush1.bf16.msra.mxu0 %v1698
        %1960 = vmatprep.subr.bf16.mxu0 0
        %1961 = vmatpush1.bf16.msra.mxu0 %v1701
        %1962 = vmatprep.subr.bf16.mxu0 0
        %1963 = vmatpush1.bf16.msra.mxu0 %v1704
        %1964 = vmatprep.subr.bf16.mxu0 0
        %1965 = vmatpush1.bf16.msra.mxu0 %v1707
        %1966 = vmatprep.subr.bf16.mxu0 0
        %1967 = vmatpush1.bf16.msra.mxu0 %v1710
        %1968 = vmatprep.subr.bf16.mxu0 0
        %1969 = vmatpush1.bf16.msra.mxu0 %v1713
        %1970 = vmatprep.subr.bf16.mxu0 0
        %1971 = vmatpush1.bf16.msra.mxu0 %v1716
        %1972 = vmatprep.mubr.bf16.mxu0 %v1172
        %1973 = vmatmul.mubr.bf16.gmra.mrb[0].mxu0 %v1171
        %v1974 = vpop.f32.mrb[0].mxu0
        %v1975 = vadd.f32 %v1934, %v1974
        %v1976 = vpop.f32.mrb[0].mxu0
        %v1977 = vpop.f32.mrb[0].mxu0
        %v1978 = vadd.f32 %v1937, %v1977
        %v1979 = vpop.f32.mrb[0].mxu0
        %1980 = vdwg.mxu0
        %v1981 = vadd.f32 %v1163, %v1891
        %v1982 = vadd.f32 %v1164, %v1893
        %v1983 = vadd.f32 %v1165, %v1975
        %v1984 = vadd.f32 %v1166, %v1895
        %v1985 = vadd.f32 %v1167, %v1897
        %v1986 = vadd.f32 %v1168, %v1978
        %1987 = vst [vmem:[#allocation2] sm:$0xff] %v1981
        %1988 = vst [vmem:[#allocation2 + $0x8] sm:$0xff] %v1982
        %1989 = vst [vmem:[#allocation2 + $0x10] sm:$0xff] %v1983
        %1990 = vst [vmem:[#allocation2 + $0x18] sm:$0xff] %v1984
        %1991 = vst [vmem:[#allocation2 + $0x20] sm:$0xff] %v1985
        %1992 = vst [vmem:[#allocation2 + $0x28] sm:$0xff] %v1986
        %p1993 = scmp.eq.s32.totalorder %s29, 2
        // Predicated region
        $region65: #{tpu_custom_call.1} parent=39 // pred_check
          %p1994 = pneg %p1993
        $region66: #{tpu_custom_call.1} parent=39 // pred_check_branch
          %1996 = sbr.rel (%p1994) target = $region68
        $region67: #{tpu_custom_call.1} parent=39 // pred_region
          %v1997 = vld [vmem:[#allocation2] sm:$0xff]
          %v1998 = vld [vmem:[#allocation2 + $0x8] sm:$0xff]
          %v1999 = vld [vmem:[#allocation2 + $0x10] sm:$0xff]
          %v2000 = vld [vmem:[#allocation2 + $0x18] sm:$0xff]
          %v2001 = vld [vmem:[#allocation2 + $0x20] sm:$0xff]
          %v2002 = vld [vmem:[#allocation2 + $0x28] sm:$0xff]
          %v2003 = vld [vmem:[#allocation11] sm:$0x7]
          %v2005 = vlaneseq
          %v2006 = vshrl.u32 %v2005, 7
          %v2007 = vsub.s32 0, %v2006
          %v2008 = vrot.slane %v2003, %v2007
          %v2009 = vlaneseq
          %v2010 = vshrl.u32 %v2009, 7
          %v2011 = vsub.s32 1, %v2010
          %v2012 = vrot.slane %v2003, %v2011
          %v2013 = vlaneseq
          %v2014 = vshrl.u32 %v2013, 7
          %v2015 = vsub.s32 2, %v2014
          %v2016 = vrot.slane %v2003, %v2015
          %v2020 = vadd.f32 %v1997, %v2008
          %v2021 = vadd.f32 %v1998, %v2012
          %v2022 = vadd.f32 %v1999, %v2016
          %v2023 = vadd.f32 %v2000, %v2008
          %v2024 = vadd.f32 %v2001, %v2012
          %v2025 = vadd.f32 %v2002, %v2016
          %2026 = vst [vmem:[#allocation12] sm:$0xff] %v2020
          %2027 = vst [vmem:[#allocation12 + $0x8] sm:$0xff] %v2021
          %2028 = vst [vmem:[#allocation12 + $0x10] sm:$0xff] %v2022
          %2029 = vst [vmem:[#allocation12 + $0x18] sm:$0xff] %v2023
          %2030 = vst [vmem:[#allocation12 + $0x20] sm:$0xff] %v2024
          %2031 = vst [vmem:[#allocation12 + $0x28] sm:$0xff] %v2025
        $region68: #{tpu_custom_call.1} parent=39 // pred_fallthru
          _
        // Predicated region
        $region69: #{tpu_custom_call.1} parent=39 // pred_check
          %p2032 = pneg %p179
        $region70: #{tpu_custom_call.1} parent=39 // pred_check_branch
          %2034 = sbr.rel (%p2032) target = $region72
        $region71: #{tpu_custom_call.1} parent=39 // pred_region
          %s2035 = smul.u32 2, %s28
          %s2037 = ssub.s32 768, 768
          %2038 = vsyncadd [#allocation5], %s2037
          %s2039 = smul.addr %s2035, 3
          %s2040 = smul.addr %s2039, 128
          %s2041 = scalar_lea.hbm %s5, %s2040
          %s2042 = sshll.u32 [#allocation12], 4
          %s2043 = int_to_ptr.vmem [resolvable:$true] %s2042
          %2048 = dma.vmem_to_hbm [thread:$0]  %s2043, 768, %s2041, [#allocation5], 384, 384, 24
        $region72: #{tpu_custom_call.1} parent=39 // pred_fallthru
          _
        // Predicated region
        $region73: #{tpu_custom_call.1} parent=39 // pred_check
          %p2049 = pneg %p179
        $region74: #{tpu_custom_call.1} parent=39 // pred_check_branch
          %2051 = sbr.rel (%p2049) target = $region76
        $region75: #{tpu_custom_call.1} parent=39 // pred_region
          %2052 = dma.done [#allocation5], 768
        $region76: #{tpu_custom_call.1} parent=39 // pred_fallthru
          _
      $region40: #{tpu_custom_call.1} parent=5 // pred_fallthru
        _
      %p2053 = scmp.le.s32.totalorder 2, %s19
      // Predicated region
      $region77: #{tpu_custom_call.1} parent=5 // pred_check
        %p2054 = pneg %p2053
      $region78: #{tpu_custom_call.1} parent=5 // pred_check_branch
        %2056 = sbr.rel (%p2054) target = $region80
      $region79: #{tpu_custom_call.1} parent=5 // pred_region
        %s2057 = ssub.s32 %s19, 2
      $region80: #{tpu_custom_call.1} parent=5 // pred_fallthru
        _
    $region6: #{tpu_custom_call.1} parent=1 // loop_footer
      %s23 = sadd.s32 1, %s19
    $region7: #{tpu_custom_call.1} parent=1 // loop_footer_branch
      %18 = sbr.rel target = $region3
    $region8: #{tpu_custom_call.1} parent=1 // loop_exit
      _
    %2058 = vsyncpa [#allocation4], 1
    %s2059 = scalar_lea.sflag [#allocation4], 1
    %2060 = vsyncpa %s2059, 1
    %2061 = vsyncpa [#allocation7], 1
    %s2062 = scalar_lea.sflag [#allocation7], 1
    %2063 = vsyncpa %s2062, 1
    %2064 = vsyncpa [#allocation10], 1
    %s2065 = scalar_lea.sflag [#allocation10], 1
    %2066 = vsyncpa %s2065, 1
    %2067 = vsyncpa [#allocation5], 1
    %s2068 = scalar_lea.sflag [#allocation5], 1
    %2069 = vsyncpa %s2068, 1

</llo_original>
